<compile_context>
chip_gen: v6e
topology: v6e:2x2x1
jax: 0.10.0
libtpu: 0.0.40
codegen_flags: <defaults>
</compile_context>

<pallas_src>
import math

import jax
import jax.numpy as jnp
from jax.experimental import pallas as pl
from jax.experimental.pallas import tpu as pltpu

LN_EPS = 1e-6
GRN_EPS = 1e-6


def _gelu(x):
    c = math.sqrt(2.0 / math.pi)
    return 0.5 * x * (1.0 + jnp.tanh(c * (x + 0.044715 * x * x * x)))


def _row_layernorm(x, gamma, beta):
    # LayerNorm over the last (channel) axis, biased variance, eps = 1e-6.
    mu = jnp.mean(x, axis=-1, keepdims=True)
    xc = x - mu
    var = jnp.mean(xc * xc, axis=-1, keepdims=True)
    return xc * jax.lax.rsqrt(var + LN_EPS) * gamma + beta


# ---------------------------------------------------------------------------
# Kernels
# ---------------------------------------------------------------------------
def stem_kernel(x_ref, w_ref, b_ref, g_ref, be_ref, o_ref):
    """Conv1d(kernel=4, valid) + LayerNorm(channels_first). x_ref: (1, T, Cin)."""
    t_out = o_ref.shape[1]
    n_taps = w_ref.shape[0]
    x = x_ref[0].astype(jnp.float32)                       # (T, Cin)
    y = b_ref[...].astype(jnp.float32)                     # (1, D) -> broadcast
    for k in range(n_taps):
        y = y + jnp.dot(x[k:k + t_out, :], w_ref[k],
                        preferred_element_type=jnp.float32)
    o_ref[0] = _row_layernorm(y, g_ref[...], be_ref[...]).astype(o_ref.dtype)


def tsconvnext_kernel(x_ref, wp_ref, bp_ref, wdw_ref, bdw_ref,
                      w1s_ref, b1s_ref, lng_ref, lnb_ref,
                      wp1_ref, bp1_ref, grng_ref, grnb_ref,
                      wp2_ref, bp2_ref, o_ref, pad_ref):
    """One fused TSConvNeXt block. x_ref: (1, T, C)."""
    T = x_ref.shape[1]
    k_max = wdw_ref.shape[0]
    p_max = (k_max - 1) // 2
    p_al = pad_ref.shape[0] - T - p_max                    # aligned write offset

    x_in = x_ref[0].astype(jnp.float32)                    # (T, C)

    # projection_linear (1x1 conv)
    h = jnp.dot(x_in, wp_ref[...], preferred_element_type=jnp.float32) + bp_ref[...]

    # multi-scale grouped depthwise conv, folded into one per-channel conv with
    # zero-padded taps (wrapper did the folding).  Zero-pad in time via scratch.
    pad_ref[...] = jnp.zeros_like(pad_ref)
    pad_ref[p_al:p_al + T, :] = h
    start = p_al - p_max
    y = bdw_ref[...]                                       # (1, C)
    for k in range(k_max):
        y = y + pad_ref[start + k:start + k + T, :] * wdw_ref[k:k + 1, :]
    y = _gelu(y)

    # pwconv_1stage + first residual
    z = jnp.dot(y, w1s_ref[...], preferred_element_type=jnp.float32) + b1s_ref[...]
    x1 = x_in + z

    # LayerNorm -> pwconv1 -> GELU -> GRN -> pwconv2 -> second residual
    n = _row_layernorm(x1, lng_ref[...], lnb_ref[...])
    h1 = jnp.dot(n, wp1_ref[...], preferred_element_type=jnp.float32) + bp1_ref[...]
    h1 = _gelu(h1)
    gx = jnp.sqrt(jnp.sum(h1 * h1, axis=0, keepdims=True))          # (1, 4C), L2 over T
    nx = gx / (jnp.mean(gx, axis=1, keepdims=True) + GRN_EPS)
    h1 = grng_ref[...] * (h1 * nx) + grnb_ref[...] + h1
    h2 = jnp.dot(h1, wp2_ref[...], preferred_element_type=jnp.float32) + bp2_ref[...]

    o_ref[0] = (x1 + h2).astype(o_ref.dtype)


def mfa_kernel(x_ref, w_ref, b_ref, g_ref, be_ref, o_ref):
    """MFA: Conv1d(kernel=1) + LayerNorm(channels_first). x_ref: (1, T, 3D)."""
    x = x_ref[0].astype(jnp.float32)
    y = jnp.dot(x, w_ref[...], preferred_element_type=jnp.float32) + b_ref[...]
    o_ref[0] = _row_layernorm(y, g_ref[...], be_ref[...]).astype(o_ref.dtype)


# ---------------------------------------------------------------------------
# Wrapper
# ---------------------------------------------------------------------------
def _full_spec(a):
    nd = a.ndim
    return pl.BlockSpec(a.shape, lambda b, _nd=nd: (0,) * _nd)


def _batched_call(kernel, x_btc, weights, out_t, out_c, scratch_shapes=()):
    B = x_btc.shape[0]
    in_specs = [pl.BlockSpec((1,) + x_btc.shape[1:], lambda b: (b, 0, 0))]
    in_specs += [_full_spec(w) for w in weights]
    return pl.pallas_call(
        kernel,
        out_shape=jax.ShapeDtypeStruct((B, out_t, out_c), jnp.float32),
        grid=(B,),
        in_specs=in_specs,
        out_specs=pl.BlockSpec((1, out_t, out_c), lambda b: (b, 0, 0)),
        scratch_shapes=list(scratch_shapes),
        compiler_params=pltpu.CompilerParams(dimension_semantics=("parallel",)),
    )(x_btc, *weights)


def next_tdnn_forward(x_nct, params, kernel_sizes, depths):
    """x_nct: (B, C_in, T) float32 -> (B, 3*D, T - 3) like the PyTorch module."""
    B, c_in, T = x_nct.shape
    x = jnp.transpose(x_nct, (0, 2, 1)).astype(jnp.float32)         # (B, T, Cin)

    # ---- stem: Conv1d(k=4, valid) + LN(channels_first) ----
    sp = params["stem"]
    D = sp["w"].shape[0]
    K = sp["w"].shape[2]
    t_out = T - K + 1
    stem_args = (jnp.transpose(sp["w"], (2, 1, 0)),                 # (K, Cin, D)
                 sp["b"].reshape(1, D),
                 sp["g"].reshape(1, D), sp["be"].reshape(1, D))
    x = _batched_call(stem_kernel, x, stem_args, t_out, D)
    T = t_out

    # ---- TSConvNeXt stages ----
    num_scale = len(kernel_sizes)
    G = D // num_scale
    k_max = max(kernel_sizes)
    p_max = (k_max - 1) // 2
    p_al = ((p_max + 7) // 8) * 8                                   # sublane-aligned
    blk = 0
    mfa_in = []
    for depth in depths:
        for _ in range(depth):
            bp = params["blocks"][blk]
            blk += 1
            # Fold all parameter reshapes / the multi-scale depthwise kernels here.
            wdw = jnp.zeros((k_max, D), jnp.float32)
            for i, Ki in enumerate(kernel_sizes):
                off = (k_max - Ki) // 2
                wi = jnp.transpose(bp["dw_w"][i][:, 0, :])          # (Ki, G)
                wdw = wdw.at[off:off + Ki, i * G:(i + 1) * G].set(wi)
            wargs = (
                jnp.transpose(bp["proj_w"][:, :, 0]),               # (D, D)
                bp["proj_b"].reshape(1, D),
                wdw,
                jnp.concatenate(bp["dw_b"]).reshape(1, D),
                jnp.transpose(bp["pw1s_w"]),                        # (D, D)
                bp["pw1s_b"].reshape(1, D),
                bp["ln_g"].reshape(1, D), bp["ln_b"].reshape(1, D),
                jnp.transpose(bp["pw1_w"]),                         # (D, 4D)
                bp["pw1_b"].reshape(1, 4 * D),
                bp["grn_g"].reshape(1, 4 * D), bp["grn_b"].reshape(1, 4 * D),
                jnp.transpose(bp["pw2_w"]),                         # (4D, D)
                bp["pw2_b"].reshape(1, D),
            )
            x = _batched_call(
                tsconvnext_kernel, x, wargs, T, D,
                scratch_shapes=[pltpu.VMEM((p_al + T + p_max, D), jnp.float32)])
        mfa_in.append(x)

    # ---- MFA: Conv1d(k=1) + LN(channels_first) over concatenated stage outputs ----
    xc = jnp.concatenate(mfa_in, axis=-1)                           # (B, T, 3D)
    mp = params["mfa"]
    cm = xc.shape[-1]
    margs = (jnp.transpose(mp["w"][:, :, 0]), mp["b"].reshape(1, cm),
             mp["g"].reshape(1, cm), mp["be"].reshape(1, cm))
    y = _batched_call(mfa_kernel, xc, margs, T, cm)
    return jnp.transpose(y, (0, 2, 1))                              # (B, 3D, T)


# ---------------------------------------------------------------------------
# Pure-JAX reference (mirrors the PyTorch forward in NCT layout, eval mode)
# ---------------------------------------------------------------------------
def _reference(x_nct, params, kernel_sizes, depths):
    P = jax.lax.Precision.HIGHEST

    def ln_cf(x_bct, g, b):
        u = jnp.mean(x_bct, axis=1, keepdims=True)
        s = jnp.mean((x_bct - u) ** 2, axis=1, keepdims=True)
        return (x_bct - u) / jnp.sqrt(s + LN_EPS) * g[None, :, None] + b[None, :, None]

    def ln_cl(x_btc, g, b):
        u = jnp.mean(x_btc, axis=-1, keepdims=True)
        s = jnp.mean((x_btc - u) ** 2, axis=-1, keepdims=True)
        return (x_btc - u) / jnp.sqrt(s + LN_EPS) * g + b

    sp = params["stem"]
    K = sp["w"].shape[2]
    t_out = x_nct.shape[2] - K + 1
    acc = jnp.zeros((x_nct.shape[0], sp["w"].shape[0], t_out), jnp.float32) \
        + sp["b"][None, :, None]
    for k in range(K):
        acc = acc + jnp.einsum("oi,bit->bot", sp["w"][:, :, k],
                               x_nct[:, :, k:k + t_out], precision=P)
    x = ln_cf(acc, sp["g"], sp["be"])

    num_scale = len(kernel_sizes)
    blk = 0
    mfa_in = []
    for depth in depths:
        for _ in range(depth):
            bp = params["blocks"][blk]
            blk += 1
            inp = x
            h = jnp.einsum("oi,bit->bot", bp["proj_w"][:, :, 0], x, precision=P) \
                + bp["proj_b"][None, :, None]
            G = h.shape[1] // num_scale
            pieces = []
            for i, Ki in enumerate(kernel_sizes):
                xi = h[:, i * G:(i + 1) * G, :]
                Pi = (Ki - 1) // 2
                xp = jnp.pad(xi, ((0, 0), (0, 0), (Pi, Pi)))
                wi = bp["dw_w"][i][:, 0, :]                         # (G, Ki)
                yi = jnp.zeros_like(xi) + bp["dw_b"][i][None, :, None]
                for k in range(Ki):
                    yi = yi + wi[:, k][None, :, None] * xp[:, :, k:k + xi.shape[2]]
                pieces.append(yi)
            h = _gelu(jnp.concatenate(pieces, axis=1))
            h = jnp.einsum("oi,bit->bot", bp["pw1s_w"], h, precision=P) \
                + bp["pw1s_b"][None, :, None]
            x = h + inp
            inp2 = x
            n = ln_cl(jnp.transpose(x, (0, 2, 1)), bp["ln_g"], bp["ln_b"])
            h1 = _gelu(jnp.einsum("btc,oc->bto", n, bp["pw1_w"], precision=P)
                       + bp["pw1_b"])
            gx = jnp.sqrt(jnp.sum(h1 * h1, axis=1, keepdims=True))
            nx = gx / (jnp.mean(gx, axis=-1, keepdims=True) + GRN_EPS)
            h1 = bp["grn_g"] * (h1 * nx) + bp["grn_b"] + h1
            h2 = jnp.einsum("bto,co->btc", h1, bp["pw2_w"], precision=P) + bp["pw2_b"]
            x = inp2 + jnp.transpose(h2, (0, 2, 1))
        mfa_in.append(x)

    xc = jnp.concatenate(mfa_in, axis=1)
    mp = params["mfa"]
    y = jnp.einsum("oi,bit->bot", mp["w"][:, :, 0], xc, precision=P) \
        + mp["b"][None, :, None]
    return ln_cf(y, mp["g"], mp["be"])


# ---------------------------------------------------------------------------
if __name__ == "__main__":
    # Small config: in_chans=8, dims=[16,16,16], depths=[1,1,1], kernels=[3,5],
    # batch=2, T=19 (stem valid-conv -> T'=16).
    B, C_IN, T = 2, 8, 19
    dims = [16, 16, 16]
    depths = [1, 1, 1]
    kernel_sizes = [3, 5]
    D = dims[0]
    G = D // len(kernel_sizes)

    key = jax.random.PRNGKey(0)
    keys = iter(jax.random.split(key, 128))

    def nrm(shape, s=0.2):
        return s * jax.random.normal(next(keys), shape, jnp.float32)

    x_nct = jax.random.normal(next(keys), (B, C_IN, T), jnp.float32)

    params = {
        "stem": {"w": nrm((D, C_IN, 4)), "b": nrm((D,), 0.1),
                 "g": 1.0 + nrm((D,), 0.1), "be": nrm((D,), 0.1)},
        "blocks": [],
        "mfa": {"w": nrm((3 * D, 3 * D, 1), 0.1), "b": nrm((3 * D,), 0.1),
                "g": 1.0 + nrm((3 * D,), 0.1), "be": nrm((3 * D,), 0.1)},
    }
    for _ in range(sum(depths)):
        params["blocks"].append({
            "proj_w": nrm((D, D, 1)), "proj_b": nrm((D,), 0.1),
            "dw_w": [nrm((G, 1, Ki), 0.3) for Ki in kernel_sizes],
            "dw_b": [nrm((G,), 0.1) for _ in kernel_sizes],
            "pw1s_w": nrm((D, D)), "pw1s_b": nrm((D,), 0.1),
            "ln_g": 1.0 + nrm((D,), 0.1), "ln_b": nrm((D,), 0.1),
            "pw1_w": nrm((4 * D, D)), "pw1_b": nrm((4 * D,), 0.1),
            "grn_g": nrm((1, 1, 4 * D), 0.5), "grn_b": nrm((1, 1, 4 * D), 0.1),
            "pw2_w": nrm((D, 4 * D)), "pw2_b": nrm((D,), 0.1),
        })

    fwd = jax.jit(lambda xx, pp: next_tdnn_forward(xx, pp, kernel_sizes, depths))
    out = jax.block_until_ready(fwd(x_nct, params))
    ref = _reference(x_nct, params, kernel_sizes, depths)

    assert out.shape == (B, 3 * D, T - 3), out.shape
    err = float(jnp.max(jnp.abs(out - ref)))
    assert jnp.allclose(out, ref, atol=2e-3, rtol=2e-3), err
    print("KERNEL_OK")
</pallas_src>

<mosaic_0001>
module attributes {stable_mosaic.version = 11 : i64} {
  func.func @stem_kernel(%arg0: i32, %arg1: memref<1x19x8xf32, #tpu.memory_space<vmem>>, %arg2: memref<4x8x16xf32, #tpu.memory_space<vmem>>, %arg3: memref<1x16xf32, #tpu.memory_space<vmem>>, %arg4: memref<1x16xf32, #tpu.memory_space<vmem>>, %arg5: memref<1x16xf32, #tpu.memory_space<vmem>>, %arg6: memref<1x16x16xf32, #tpu.memory_space<vmem>>) attributes {dimension_semantics = [#tpu.dimension_semantics<parallel>], iteration_bounds = array<i64: 2>, scalar_prefetch = 0 : i64, scratch_operands = 0 : i64, tpu.core_type = #tpu.core_type<tc>, window_params = [{transform_indices = @transform_0, window_bounds = array<i64: 1, 19, 8>}, {pipeline_mode = #tpu.pipeline_mode<synchronous>, transform_indices = @transform_1, window_bounds = array<i64: 4, 8, 16>}, {pipeline_mode = #tpu.pipeline_mode<synchronous>, transform_indices = @transform_2, window_bounds = array<i64: 1, 16>}, {pipeline_mode = #tpu.pipeline_mode<synchronous>, transform_indices = @transform_3, window_bounds = array<i64: 1, 16>}, {pipeline_mode = #tpu.pipeline_mode<synchronous>, transform_indices = @transform_4, window_bounds = array<i64: 1, 16>}, {transform_indices = @transform_5, window_bounds = array<i64: 1, 16, 16>}]} {
    %c0 = arith.constant 0 : index
    %c0_0 = arith.constant 0 : index
    %c0_1 = arith.constant 0 : index
    %0 = vector.load %arg1[%c0, %c0_0, %c0_1] : memref<1x19x8xf32, #tpu.memory_space<vmem>>, vector<1x19x8xf32>
    %1 = vector.shape_cast %0 : vector<1x19x8xf32> to vector<19x8xf32>
    %c0_2 = arith.constant 0 : index
    %c0_3 = arith.constant 0 : index
    %2 = vector.load %arg3[%c0_2, %c0_3] : memref<1x16xf32, #tpu.memory_space<vmem>>, vector<1x16xf32>
    %3 = vector.extract_strided_slice %1 {offsets = [0, 0], sizes = [16, 8], strides = [1, 1]} : vector<19x8xf32> to vector<16x8xf32>
    %c0_4 = arith.constant 0 : index
    %c0_5 = arith.constant 0 : index
    %c0_6 = arith.constant 0 : index
    %4 = vector.load %arg2[%c0_4, %c0_5, %c0_6] : memref<4x8x16xf32, #tpu.memory_space<vmem>>, vector<1x8x16xf32>
    %5 = vector.shape_cast %4 : vector<1x8x16xf32> to vector<8x16xf32>
    %cst = arith.constant dense<0.000000e+00> : vector<16x16xf32>
    %6 = tpu.matmul %3, %5, %cst {dimension_numbers = #tpu.dot_dimension_numbers<[1], [0], [0], [1], [0, 0, 1, 1], [], []>} : vector<16x8xf32>, vector<8x16xf32>, vector<16x16xf32> -> vector<16x16xf32>
    %7 = vector.broadcast %2 : vector<1x16xf32> to vector<16x16xf32>
    %8 = arith.addf %7, %6 : vector<16x16xf32>
    %9 = vector.extract_strided_slice %1 {offsets = [1, 0], sizes = [16, 8], strides = [1, 1]} : vector<19x8xf32> to vector<16x8xf32>
    %c1 = arith.constant 1 : index
    %c0_7 = arith.constant 0 : index
    %c0_8 = arith.constant 0 : index
    %10 = vector.load %arg2[%c1, %c0_7, %c0_8] : memref<4x8x16xf32, #tpu.memory_space<vmem>>, vector<1x8x16xf32>
    %11 = vector.shape_cast %10 : vector<1x8x16xf32> to vector<8x16xf32>
    %cst_9 = arith.constant dense<0.000000e+00> : vector<16x16xf32>
    %12 = tpu.matmul %9, %11, %cst_9 {dimension_numbers = #tpu.dot_dimension_numbers<[1], [0], [0], [1], [0, 0, 1, 1], [], []>} : vector<16x8xf32>, vector<8x16xf32>, vector<16x16xf32> -> vector<16x16xf32>
    %13 = arith.addf %8, %12 : vector<16x16xf32>
    %14 = vector.extract_strided_slice %1 {offsets = [2, 0], sizes = [16, 8], strides = [1, 1]} : vector<19x8xf32> to vector<16x8xf32>
    %c2 = arith.constant 2 : index
    %c0_10 = arith.constant 0 : index
    %c0_11 = arith.constant 0 : index
    %15 = vector.load %arg2[%c2, %c0_10, %c0_11] : memref<4x8x16xf32, #tpu.memory_space<vmem>>, vector<1x8x16xf32>
    %16 = vector.shape_cast %15 : vector<1x8x16xf32> to vector<8x16xf32>
    %cst_12 = arith.constant dense<0.000000e+00> : vector<16x16xf32>
    %17 = tpu.matmul %14, %16, %cst_12 {dimension_numbers = #tpu.dot_dimension_numbers<[1], [0], [0], [1], [0, 0, 1, 1], [], []>} : vector<16x8xf32>, vector<8x16xf32>, vector<16x16xf32> -> vector<16x16xf32>
    %18 = arith.addf %13, %17 : vector<16x16xf32>
    %19 = vector.extract_strided_slice %1 {offsets = [3, 0], sizes = [16, 8], strides = [1, 1]} : vector<19x8xf32> to vector<16x8xf32>
    %c3 = arith.constant 3 : index
    %c0_13 = arith.constant 0 : index
    %c0_14 = arith.constant 0 : index
    %20 = vector.load %arg2[%c3, %c0_13, %c0_14] : memref<4x8x16xf32, #tpu.memory_space<vmem>>, vector<1x8x16xf32>
    %21 = vector.shape_cast %20 : vector<1x8x16xf32> to vector<8x16xf32>
    %cst_15 = arith.constant dense<0.000000e+00> : vector<16x16xf32>
    %22 = tpu.matmul %19, %21, %cst_15 {dimension_numbers = #tpu.dot_dimension_numbers<[1], [0], [0], [1], [0, 0, 1, 1], [], []>} : vector<16x8xf32>, vector<8x16xf32>, vector<16x16xf32> -> vector<16x16xf32>
    %23 = arith.addf %18, %22 : vector<16x16xf32>
    %c0_16 = arith.constant 0 : index
    %c0_17 = arith.constant 0 : index
    %24 = vector.load %arg4[%c0_16, %c0_17] : memref<1x16xf32, #tpu.memory_space<vmem>>, vector<1x16xf32>
    %c0_18 = arith.constant 0 : index
    %c0_19 = arith.constant 0 : index
    %25 = vector.load %arg5[%c0_18, %c0_19] : memref<1x16xf32, #tpu.memory_space<vmem>>, vector<1x16xf32>
    %cst_20 = arith.constant dense<0.000000e+00> : vector<16xf32>
    %26 = vector.multi_reduction <add>, %23, %cst_20 [1] : vector<16x16xf32> to vector<16xf32>
    %27 = vector.shape_cast %26 : vector<16xf32> to vector<16x1xf32>
    %cst_21 = arith.constant 1.600000e+01 : f32
    %28 = vector.broadcast %cst_21 : f32 to vector<16x1xf32>
    %29 = arith.divf %27, %28 : vector<16x1xf32>
    %30 = vector.broadcast %29 : vector<16x1xf32> to vector<16x16xf32>
    %31 = arith.subf %23, %30 : vector<16x16xf32>
    %32 = arith.mulf %31, %31 : vector<16x16xf32>
    %cst_22 = arith.constant dense<0.000000e+00> : vector<16xf32>
    %33 = vector.multi_reduction <add>, %32, %cst_22 [1] : vector<16x16xf32> to vector<16xf32>
    %34 = vector.shape_cast %33 : vector<16xf32> to vector<16x1xf32>
    %cst_23 = arith.constant 1.600000e+01 : f32
    %35 = vector.broadcast %cst_23 : f32 to vector<16x1xf32>
    %36 = arith.divf %34, %35 : vector<16x1xf32>
    %cst_24 = arith.constant 9.99999997E-7 : f32
    %37 = vector.broadcast %cst_24 : f32 to vector<16x1xf32>
    %38 = arith.addf %36, %37 : vector<16x1xf32>
    %39 = math.rsqrt %38 : vector<16x1xf32>
    %40 = vector.broadcast %39 : vector<16x1xf32> to vector<16x16xf32>
    %41 = arith.mulf %31, %40 : vector<16x16xf32>
    %42 = vector.broadcast %24 : vector<1x16xf32> to vector<16x16xf32>
    %43 = arith.mulf %41, %42 : vector<16x16xf32>
    %44 = vector.broadcast %25 : vector<1x16xf32> to vector<16x16xf32>
    %45 = arith.addf %43, %44 : vector<16x16xf32>
    %c0_25 = arith.constant 0 : index
    %c0_26 = arith.constant 0 : index
    %c0_27 = arith.constant 0 : index
    %46 = vector.load %arg6[%c0_25, %c0_26, %c0_27] : memref<1x16x16xf32, #tpu.memory_space<vmem>>, vector<1x16x16xf32>
    %47 = vector.shape_cast %46 : vector<1x16x16xf32> to vector<16x16xf32>
    %48 = vector.shape_cast %45 : vector<16x16xf32> to vector<1x16x16xf32>
    tpu.vector_store %arg6[%c0_25, %c0_26, %c0_27], %48 {strides = array<i32>} : memref<1x16x16xf32, #tpu.memory_space<vmem>>, vector<1x16x16xf32>,
    return
  }
  func.func @transform_0(%arg0: i32) -> (i32, i32, i32) {
    %c0_i32 = arith.constant 0 : i32
    %c0_i32_0 = arith.constant 0 : i32
    %c0_i32_1 = arith.constant 0 : i32
    return %arg0, %c0_i32, %c0_i32_0 : i32, i32, i32
  }
  func.func @transform_1(%arg0: i32) -> (i32, i32, i32) {
    %c0_i32 = arith.constant 0 : i32
    %c0_i32_0 = arith.constant 0 : i32
    %c0_i32_1 = arith.constant 0 : i32
    %c0_i32_2 = arith.constant 0 : i32
    return %c0_i32, %c0_i32_0, %c0_i32_1 : i32, i32, i32
  }
  func.func @transform_2(%arg0: i32) -> (i32, i32) {
    %c0_i32 = arith.constant 0 : i32
    %c0_i32_0 = arith.constant 0 : i32
    %c0_i32_1 = arith.constant 0 : i32
    return %c0_i32, %c0_i32_0 : i32, i32
  }
  func.func @transform_3(%arg0: i32) -> (i32, i32) {
    %c0_i32 = arith.constant 0 : i32
    %c0_i32_0 = arith.constant 0 : i32
    %c0_i32_1 = arith.constant 0 : i32
    return %c0_i32, %c0_i32_0 : i32, i32
  }
  func.func @transform_4(%arg0: i32) -> (i32, i32) {
    %c0_i32 = arith.constant 0 : i32
    %c0_i32_0 = arith.constant 0 : i32
    %c0_i32_1 = arith.constant 0 : i32
    return %c0_i32, %c0_i32_0 : i32, i32
  }
  func.func @transform_5(%arg0: i32) -> (i32, i32, i32) {
    %c0_i32 = arith.constant 0 : i32
    %c0_i32_0 = arith.constant 0 : i32
    %c0_i32_1 = arith.constant 0 : i32
    return %arg0, %c0_i32, %c0_i32_0 : i32, i32, i32
  }
}

module attributes {stable_mosaic.version = 11 : i64} {
  func.func @tsconvnext_kernel(%arg0: i32, %arg1: memref<1x16x16xf32, #tpu.memory_space<vmem>>, %arg2: memref<16x16xf32, #tpu.memory_space<vmem>>, %arg3: memref<1x16xf32, #tpu.memory_space<vmem>>, %arg4: memref<5x16xf32, #tpu.memory_space<vmem>>, %arg5: memref<1x16xf32, #tpu.memory_space<vmem>>, %arg6: memref<16x16xf32, #tpu.memory_space<vmem>>, %arg7: memref<1x16xf32, #tpu.memory_space<vmem>>, %arg8: memref<1x16xf32, #tpu.memory_space<vmem>>, %arg9: memref<1x16xf32, #tpu.memory_space<vmem>>, %arg10: memref<16x64xf32, #tpu.memory_space<vmem>>, %arg11: memref<1x64xf32, #tpu.memory_space<vmem>>, %arg12: memref<1x64xf32, #tpu.memory_space<vmem>>, %arg13: memref<1x64xf32, #tpu.memory_space<vmem>>, %arg14: memref<64x16xf32, #tpu.memory_space<vmem>>, %arg15: memref<1x16xf32, #tpu.memory_space<vmem>>, %arg16: memref<1x16x16xf32, #tpu.memory_space<vmem>>, %arg17: memref<26x16xf32, #tpu.memory_space<vmem>>) attributes {dimension_semantics = [#tpu.dimension_semantics<parallel>], iteration_bounds = array<i64: 2>, scalar_prefetch = 0 : i64, scratch_operands = 1 : i64, tpu.core_type = #tpu.core_type<tc>, window_params = [{transform_indices = @transform_0, window_bounds = array<i64: 1, 16, 16>}, {pipeline_mode = #tpu.pipeline_mode<synchronous>, transform_indices = @transform_1, window_bounds = array<i64: 16, 16>}, {pipeline_mode = #tpu.pipeline_mode<synchronous>, transform_indices = @transform_2, window_bounds = array<i64: 1, 16>}, {pipeline_mode = #tpu.pipeline_mode<synchronous>, transform_indices = @transform_3, window_bounds = array<i64: 5, 16>}, {pipeline_mode = #tpu.pipeline_mode<synchronous>, transform_indices = @transform_4, window_bounds = array<i64: 1, 16>}, {pipeline_mode = #tpu.pipeline_mode<synchronous>, transform_indices = @transform_5, window_bounds = array<i64: 16, 16>}, {pipeline_mode = #tpu.pipeline_mode<synchronous>, transform_indices = @transform_6, window_bounds = array<i64: 1, 16>}, {pipeline_mode = #tpu.pipeline_mode<synchronous>, transform_indices = @transform_7, window_bounds = array<i64: 1, 16>}, {pipeline_mode = #tpu.pipeline_mode<synchronous>, transform_indices = @transform_8, window_bounds = array<i64: 1, 16>}, {pipeline_mode = #tpu.pipeline_mode<synchronous>, transform_indices = @transform_9, window_bounds = array<i64: 16, 64>}, {pipeline_mode = #tpu.pipeline_mode<synchronous>, transform_indices = @transform_10, window_bounds = array<i64: 1, 64>}, {pipeline_mode = #tpu.pipeline_mode<synchronous>, transform_indices = @transform_11, window_bounds = array<i64: 1, 64>}, {pipeline_mode = #tpu.pipeline_mode<synchronous>, transform_indices = @transform_12, window_bounds = array<i64: 1, 64>}, {pipeline_mode = #tpu.pipeline_mode<synchronous>, transform_indices = @transform_13, window_bounds = array<i64: 64, 16>}, {pipeline_mode = #tpu.pipeline_mode<synchronous>, transform_indices = @transform_14, window_bounds = array<i64: 1, 16>}, {transform_indices = @transform_15, window_bounds = array<i64: 1, 16, 16>}]} {
    %c0 = arith.constant 0 : index
    %c0_0 = arith.constant 0 : index
    %c0_1 = arith.constant 0 : index
    %0 = vector.load %arg1[%c0, %c0_0, %c0_1] : memref<1x16x16xf32, #tpu.memory_space<vmem>>, vector<1x16x16xf32>
    %1 = vector.shape_cast %0 : vector<1x16x16xf32> to vector<16x16xf32>
    %c0_2 = arith.constant 0 : index
    %c0_3 = arith.constant 0 : index
    %2 = vector.load %arg2[%c0_2, %c0_3] : memref<16x16xf32, #tpu.memory_space<vmem>>, vector<16x16xf32>
    %cst = arith.constant dense<0.000000e+00> : vector<16x16xf32>
    %3 = tpu.matmul %1, %2, %cst {dimension_numbers = #tpu.dot_dimension_numbers<[1], [0], [0], [1], [0, 0, 1, 1], [], []>} : vector<16x16xf32>, vector<16x16xf32>, vector<16x16xf32> -> vector<16x16xf32>
    %c0_4 = arith.constant 0 : index
    %c0_5 = arith.constant 0 : index
    %4 = vector.load %arg3[%c0_4, %c0_5] : memref<1x16xf32, #tpu.memory_space<vmem>>, vector<1x16xf32>
    %5 = vector.broadcast %4 : vector<1x16xf32> to vector<16x16xf32>
    %6 = arith.addf %3, %5 : vector<16x16xf32>
    %cst_6 = arith.constant 0.000000e+00 : f32
    %7 = vector.broadcast %cst_6 : f32 to vector<26x16xf32>
    %c0_7 = arith.constant 0 : index
    %c0_8 = arith.constant 0 : index
    %8 = vector.load %arg17[%c0_7, %c0_8] : memref<26x16xf32, #tpu.memory_space<vmem>>, vector<26x16xf32>
    tpu.vector_store %arg17[%c0_7, %c0_8], %7 {strides = array<i32>} : memref<26x16xf32, #tpu.memory_space<vmem>>, vector<26x16xf32>,
    %c8 = arith.constant 8 : index
    %c0_9 = arith.constant 0 : index
    %9 = vector.load %arg17[%c8, %c0_9] : memref<26x16xf32, #tpu.memory_space<vmem>>, vector<16x16xf32>
    tpu.vector_store %arg17[%c8, %c0_9], %6 {strides = array<i32>} : memref<26x16xf32, #tpu.memory_space<vmem>>, vector<16x16xf32>,
    %c0_10 = arith.constant 0 : index
    %c0_11 = arith.constant 0 : index
    %10 = vector.load %arg5[%c0_10, %c0_11] : memref<1x16xf32, #tpu.memory_space<vmem>>, vector<1x16xf32>
    %c6 = arith.constant 6 : index
    %c0_12 = arith.constant 0 : index
    %11 = vector.load %arg17[%c6, %c0_12] : memref<26x16xf32, #tpu.memory_space<vmem>>, vector<16x16xf32>
    %c0_13 = arith.constant 0 : index
    %c0_14 = arith.constant 0 : index
    %12 = vector.load %arg4[%c0_13, %c0_14] : memref<5x16xf32, #tpu.memory_space<vmem>>, vector<1x16xf32>
    %13 = vector.broadcast %12 : vector<1x16xf32> to vector<16x16xf32>
    %14 = arith.mulf %11, %13 : vector<16x16xf32>
    %15 = vector.broadcast %10 : vector<1x16xf32> to vector<16x16xf32>
    %16 = arith.addf %15, %14 : vector<16x16xf32>
    %c7 = arith.constant 7 : index
    %c0_15 = arith.constant 0 : index
    %17 = vector.load %arg17[%c7, %c0_15] : memref<26x16xf32, #tpu.memory_space<vmem>>, vector<16x16xf32>
    %c1 = arith.constant 1 : index
    %c0_16 = arith.constant 0 : index
    %18 = vector.load %arg4[%c1, %c0_16] : memref<5x16xf32, #tpu.memory_space<vmem>>, vector<1x16xf32>
    %19 = vector.broadcast %18 : vector<1x16xf32> to vector<16x16xf32>
    %20 = arith.mulf %17, %19 : vector<16x16xf32>
    %21 = arith.addf %16, %20 : vector<16x16xf32>
    %c8_17 = arith.constant 8 : index
    %c0_18 = arith.constant 0 : index
    %22 = vector.load %arg17[%c8_17, %c0_18] : memref<26x16xf32, #tpu.memory_space<vmem>>, vector<16x16xf32>
    %c2 = arith.constant 2 : index
    %c0_19 = arith.constant 0 : index
    %23 = vector.load %arg4[%c2, %c0_19] : memref<5x16xf32, #tpu.memory_space<vmem>>, vector<1x16xf32>
    %24 = vector.broadcast %23 : vector<1x16xf32> to vector<16x16xf32>
    %25 = arith.mulf %22, %24 : vector<16x16xf32>
    %26 = arith.addf %21, %25 : vector<16x16xf32>
    %c9 = arith.constant 9 : index
    %c0_20 = arith.constant 0 : index
    %27 = vector.load %arg17[%c9, %c0_20] : memref<26x16xf32, #tpu.memory_space<vmem>>, vector<16x16xf32>
    %c3 = arith.constant 3 : index
    %c0_21 = arith.constant 0 : index
    %28 = vector.load %arg4[%c3, %c0_21] : memref<5x16xf32, #tpu.memory_space<vmem>>, vector<1x16xf32>
    %29 = vector.broadcast %28 : vector<1x16xf32> to vector<16x16xf32>
    %30 = arith.mulf %27, %29 : vector<16x16xf32>
    %31 = arith.addf %26, %30 : vector<16x16xf32>
    %c10 = arith.constant 10 : index
    %c0_22 = arith.constant 0 : index
    %32 = vector.load %arg17[%c10, %c0_22] : memref<26x16xf32, #tpu.memory_space<vmem>>, vector<16x16xf32>
    %c4 = arith.constant 4 : index
    %c0_23 = arith.constant 0 : index
    %33 = vector.load %arg4[%c4, %c0_23] : memref<5x16xf32, #tpu.memory_space<vmem>>, vector<1x16xf32>
    %34 = vector.broadcast %33 : vector<1x16xf32> to vector<16x16xf32>
    %35 = arith.mulf %32, %34 : vector<16x16xf32>
    %36 = arith.addf %31, %35 : vector<16x16xf32>
    %cst_24 = arith.constant 5.000000e-01 : f32
    %37 = vector.broadcast %cst_24 : f32 to vector<16x16xf32>
    %38 = arith.mulf %37, %36 : vector<16x16xf32>
    %cst_25 = arith.constant 4.471500e-02 : f32
    %39 = vector.broadcast %cst_25 : f32 to vector<16x16xf32>
    %40 = arith.mulf %39, %36 : vector<16x16xf32>
    %41 = arith.mulf %40, %36 : vector<16x16xf32>
    %42 = arith.mulf %41, %36 : vector<16x16xf32>
    %43 = arith.addf %36, %42 : vector<16x16xf32>
    %cst_26 = arith.constant 0.797884583 : f32
    %44 = vector.broadcast %cst_26 : f32 to vector<16x16xf32>
    %45 = arith.mulf %44, %43 : vector<16x16xf32>
    %46 = math.tanh %45 : vector<16x16xf32>
    %cst_27 = arith.constant 1.000000e+00 : f32
    %47 = vector.broadcast %cst_27 : f32 to vector<16x16xf32>
    %48 = arith.addf %47, %46 : vector<16x16xf32>
    %49 = arith.mulf %38, %48 : vector<16x16xf32>
    %c0_28 = arith.constant 0 : index
    %c0_29 = arith.constant 0 : index
    %50 = vector.load %arg6[%c0_28, %c0_29] : memref<16x16xf32, #tpu.memory_space<vmem>>, vector<16x16xf32>
    %cst_30 = arith.constant dense<0.000000e+00> : vector<16x16xf32>
    %51 = tpu.matmul %49, %50, %cst_30 {dimension_numbers = #tpu.dot_dimension_numbers<[1], [0], [0], [1], [0, 0, 1, 1], [], []>} : vector<16x16xf32>, vector<16x16xf32>, vector<16x16xf32> -> vector<16x16xf32>
    %c0_31 = arith.constant 0 : index
    %c0_32 = arith.constant 0 : index
    %52 = vector.load %arg7[%c0_31, %c0_32] : memref<1x16xf32, #tpu.memory_space<vmem>>, vector<1x16xf32>
    %53 = vector.broadcast %52 : vector<1x16xf32> to vector<16x16xf32>
    %54 = arith.addf %51, %53 : vector<16x16xf32>
    %55 = arith.addf %1, %54 : vector<16x16xf32>
    %c0_33 = arith.constant 0 : index
    %c0_34 = arith.constant 0 : index
    %56 = vector.load %arg8[%c0_33, %c0_34] : memref<1x16xf32, #tpu.memory_space<vmem>>, vector<1x16xf32>
    %c0_35 = arith.constant 0 : index
    %c0_36 = arith.constant 0 : index
    %57 = vector.load %arg9[%c0_35, %c0_36] : memref<1x16xf32, #tpu.memory_space<vmem>>, vector<1x16xf32>
    %cst_37 = arith.constant dense<0.000000e+00> : vector<16xf32>
    %58 = vector.multi_reduction <add>, %55, %cst_37 [1] : vector<16x16xf32> to vector<16xf32>
    %59 = vector.shape_cast %58 : vector<16xf32> to vector<16x1xf32>
    %cst_38 = arith.constant 1.600000e+01 : f32
    %60 = vector.broadcast %cst_38 : f32 to vector<16x1xf32>
    %61 = arith.divf %59, %60 : vector<16x1xf32>
    %62 = vector.broadcast %61 : vector<16x1xf32> to vector<16x16xf32>
    %63 = arith.subf %55, %62 : vector<16x16xf32>
    %64 = arith.mulf %63, %63 : vector<16x16xf32>
    %cst_39 = arith.constant dense<0.000000e+00> : vector<16xf32>
    %65 = vector.multi_reduction <add>, %64, %cst_39 [1] : vector<16x16xf32> to vector<16xf32>
    %66 = vector.shape_cast %65 : vector<16xf32> to vector<16x1xf32>
    %cst_40 = arith.constant 1.600000e+01 : f32
    %67 = vector.broadcast %cst_40 : f32 to vector<16x1xf32>
    %68 = arith.divf %66, %67 : vector<16x1xf32>
    %cst_41 = arith.constant 9.99999997E-7 : f32
    %69 = vector.broadcast %cst_41 : f32 to vector<16x1xf32>
    %70 = arith.addf %68, %69 : vector<16x1xf32>
    %71 = math.rsqrt %70 : vector<16x1xf32>
    %72 = vector.broadcast %71 : vector<16x1xf32> to vector<16x16xf32>
    %73 = arith.mulf %63, %72 : vector<16x16xf32>
    %74 = vector.broadcast %56 : vector<1x16xf32> to vector<16x16xf32>
    %75 = arith.mulf %73, %74 : vector<16x16xf32>
    %76 = vector.broadcast %57 : vector<1x16xf32> to vector<16x16xf32>
    %77 = arith.addf %75, %76 : vector<16x16xf32>
    %c0_42 = arith.constant 0 : index
    %c0_43 = arith.constant 0 : index
    %78 = vector.load %arg10[%c0_42, %c0_43] : memref<16x64xf32, #tpu.memory_space<vmem>>, vector<16x64xf32>
    %cst_44 = arith.constant dense<0.000000e+00> : vector<16x64xf32>
    %79 = tpu.matmul %77, %78, %cst_44 {dimension_numbers = #tpu.dot_dimension_numbers<[1], [0], [0], [1], [0, 0, 1, 1], [], []>} : vector<16x16xf32>, vector<16x64xf32>, vector<16x64xf32> -> vector<16x64xf32>
    %c0_45 = arith.constant 0 : index
    %c0_46 = arith.constant 0 : index
    %80 = vector.load %arg11[%c0_45, %c0_46] : memref<1x64xf32, #tpu.memory_space<vmem>>, vector<1x64xf32>
    %81 = vector.broadcast %80 : vector<1x64xf32> to vector<16x64xf32>
    %82 = arith.addf %79, %81 : vector<16x64xf32>
    %cst_47 = arith.constant 5.000000e-01 : f32
    %83 = vector.broadcast %cst_47 : f32 to vector<16x64xf32>
    %84 = arith.mulf %83, %82 : vector<16x64xf32>
    %cst_48 = arith.constant 4.471500e-02 : f32
    %85 = vector.broadcast %cst_48 : f32 to vector<16x64xf32>
    %86 = arith.mulf %85, %82 : vector<16x64xf32>
    %87 = arith.mulf %86, %82 : vector<16x64xf32>
    %88 = arith.mulf %87, %82 : vector<16x64xf32>
    %89 = arith.addf %82, %88 : vector<16x64xf32>
    %cst_49 = arith.constant 0.797884583 : f32
    %90 = vector.broadcast %cst_49 : f32 to vector<16x64xf32>
    %91 = arith.mulf %90, %89 : vector<16x64xf32>
    %92 = math.tanh %91 : vector<16x64xf32>
    %cst_50 = arith.constant 1.000000e+00 : f32
    %93 = vector.broadcast %cst_50 : f32 to vector<16x64xf32>
    %94 = arith.addf %93, %92 : vector<16x64xf32>
    %95 = arith.mulf %84, %94 : vector<16x64xf32>
    %96 = arith.mulf %95, %95 : vector<16x64xf32>
    %cst_51 = arith.constant dense<0.000000e+00> : vector<64xf32>
    %97 = vector.multi_reduction <add>, %96, %cst_51 [0] : vector<16x64xf32> to vector<64xf32>
    %98 = vector.shape_cast %97 : vector<64xf32> to vector<1x64xf32>
    %99 = math.sqrt %98 : vector<1x64xf32>
    %cst_52 = arith.constant dense<0.000000e+00> : vector<1xf32>
    %100 = vector.multi_reduction <add>, %99, %cst_52 [1] : vector<1x64xf32> to vector<1xf32>
    %101 = vector.shape_cast %100 : vector<1xf32> to vector<1x1xf32>
    %cst_53 = arith.constant 6.400000e+01 : f32
    %102 = vector.broadcast %cst_53 : f32 to vector<1x1xf32>
    %103 = arith.divf %101, %102 : vector<1x1xf32>
    %cst_54 = arith.constant 9.99999997E-7 : f32
    %104 = vector.broadcast %cst_54 : f32 to vector<1x1xf32>
    %105 = arith.addf %103, %104 : vector<1x1xf32>
    %106 = vector.broadcast %105 : vector<1x1xf32> to vector<1x64xf32>
    %107 = arith.divf %99, %106 : vector<1x64xf32>
    %c0_55 = arith.constant 0 : index
    %c0_56 = arith.constant 0 : index
    %108 = vector.load %arg12[%c0_55, %c0_56] : memref<1x64xf32, #tpu.memory_space<vmem>>, vector<1x64xf32>
    %109 = vector.broadcast %107 : vector<1x64xf32> to vector<16x64xf32>
    %110 = arith.mulf %95, %109 : vector<16x64xf32>
    %111 = vector.broadcast %108 : vector<1x64xf32> to vector<16x64xf32>
    %112 = arith.mulf %111, %110 : vector<16x64xf32>
    %c0_57 = arith.constant 0 : index
    %c0_58 = arith.constant 0 : index
    %113 = vector.load %arg13[%c0_57, %c0_58] : memref<1x64xf32, #tpu.memory_space<vmem>>, vector<1x64xf32>
    %114 = vector.broadcast %113 : vector<1x64xf32> to vector<16x64xf32>
    %115 = arith.addf %112, %114 : vector<16x64xf32>
    %116 = arith.addf %115, %95 : vector<16x64xf32>
    %c0_59 = arith.constant 0 : index
    %c0_60 = arith.constant 0 : index
    %117 = vector.load %arg14[%c0_59, %c0_60] : memref<64x16xf32, #tpu.memory_space<vmem>>, vector<64x16xf32>
    %cst_61 = arith.constant dense<0.000000e+00> : vector<16x16xf32>
    %118 = tpu.matmul %116, %117, %cst_61 {dimension_numbers = #tpu.dot_dimension_numbers<[1], [0], [0], [1], [0, 0, 1, 1], [], []>} : vector<16x64xf32>, vector<64x16xf32>, vector<16x16xf32> -> vector<16x16xf32>
    %c0_62 = arith.constant 0 : index
    %c0_63 = arith.constant 0 : index
    %119 = vector.load %arg15[%c0_62, %c0_63] : memref<1x16xf32, #tpu.memory_space<vmem>>, vector<1x16xf32>
    %120 = vector.broadcast %119 : vector<1x16xf32> to vector<16x16xf32>
    %121 = arith.addf %118, %120 : vector<16x16xf32>
    %122 = arith.addf %55, %121 : vector<16x16xf32>
    %c0_64 = arith.constant 0 : index
    %c0_65 = arith.constant 0 : index
    %c0_66 = arith.constant 0 : index
    %123 = vector.load %arg16[%c0_64, %c0_65, %c0_66] : memref<1x16x16xf32, #tpu.memory_space<vmem>>, vector<1x16x16xf32>
    %124 = vector.shape_cast %123 : vector<1x16x16xf32> to vector<16x16xf32>
    %125 = vector.shape_cast %122 : vector<16x16xf32> to vector<1x16x16xf32>
    tpu.vector_store %arg16[%c0_64, %c0_65, %c0_66], %125 {strides = array<i32>} : memref<1x16x16xf32, #tpu.memory_space<vmem>>, vector<1x16x16xf32>,
    return
  }
  func.func @transform_0(%arg0: i32) -> (i32, i32, i32) {
    %c0_i32 = arith.constant 0 : i32
    %c0_i32_0 = arith.constant 0 : i32
    %c0_i32_1 = arith.constant 0 : i32
    return %arg0, %c0_i32, %c0_i32_0 : i32, i32, i32
  }
  func.func @transform_1(%arg0: i32) -> (i32, i32) {
    %c0_i32 = arith.constant 0 : i32
    %c0_i32_0 = arith.constant 0 : i32
    %c0_i32_1 = arith.constant 0 : i32
    return %c0_i32, %c0_i32_0 : i32, i32
  }
  func.func @transform_2(%arg0: i32) -> (i32, i32) {
    %c0_i32 = arith.constant 0 : i32
    %c0_i32_0 = arith.constant 0 : i32
    %c0_i32_1 = arith.constant 0 : i32
    return %c0_i32, %c0_i32_0 : i32, i32
  }
  func.func @transform_3(%arg0: i32) -> (i32, i32) {
    %c0_i32 = arith.constant 0 : i32
    %c0_i32_0 = arith.constant 0 : i32
    %c0_i32_1 = arith.constant 0 : i32
    return %c0_i32, %c0_i32_0 : i32, i32
  }
  func.func @transform_4(%arg0: i32) -> (i32, i32) {
    %c0_i32 = arith.constant 0 : i32
    %c0_i32_0 = arith.constant 0 : i32
    %c0_i32_1 = arith.constant 0 : i32
    return %c0_i32, %c0_i32_0 : i32, i32
  }
  func.func @transform_5(%arg0: i32) -> (i32, i32) {
    %c0_i32 = arith.constant 0 : i32
    %c0_i32_0 = arith.constant 0 : i32
    %c0_i32_1 = arith.constant 0 : i32
    return %c0_i32, %c0_i32_0 : i32, i32
  }
  func.func @transform_6(%arg0: i32) -> (i32, i32) {
    %c0_i32 = arith.constant 0 : i32
    %c0_i32_0 = arith.constant 0 : i32
    %c0_i32_1 = arith.constant 0 : i32
    return %c0_i32, %c0_i32_0 : i32, i32
  }
  func.func @transform_7(%arg0: i32) -> (i32, i32) {
    %c0_i32 = arith.constant 0 : i32
    %c0_i32_0 = arith.constant 0 : i32
    %c0_i32_1 = arith.constant 0 : i32
    return %c0_i32, %c0_i32_0 : i32, i32
  }
  func.func @transform_8(%arg0: i32) -> (i32, i32) {
    %c0_i32 = arith.constant 0 : i32
    %c0_i32_0 = arith.constant 0 : i32
    %c0_i32_1 = arith.constant 0 : i32
    return %c0_i32, %c0_i32_0 : i32, i32
  }
  func.func @transform_9(%arg0: i32) -> (i32, i32) {
    %c0_i32 = arith.constant 0 : i32
    %c0_i32_0 = arith.constant 0 : i32
    %c0_i32_1 = arith.constant 0 : i32
    return %c0_i32, %c0_i32_0 : i32, i32
  }
  func.func @transform_10(%arg0: i32) -> (i32, i32) {
    %c0_i32 = arith.constant 0 : i32
    %c0_i32_0 = arith.constant 0 : i32
    %c0_i32_1 = arith.constant 0 : i32
    return %c0_i32, %c0_i32_0 : i32, i32
  }
  func.func @transform_11(%arg0: i32) -> (i32, i32) {
    %c0_i32 = arith.constant 0 : i32
    %c0_i32_0 = arith.constant 0 : i32
    %c0_i32_1 = arith.constant 0 : i32
    return %c0_i32, %c0_i32_0 : i32, i32
  }
  func.func @transform_12(%arg0: i32) -> (i32, i32) {
    %c0_i32 = arith.constant 0 : i32
    %c0_i32_0 = arith.constant 0 : i32
    %c0_i32_1 = arith.constant 0 : i32
    return %c0_i32, %c0_i32_0 : i32, i32
  }
  func.func @transform_13(%arg0: i32) -> (i32, i32) {
    %c0_i32 = arith.constant 0 : i32
    %c0_i32_0 = arith.constant 0 : i32
    %c0_i32_1 = arith.constant 0 : i32
    return %c0_i32, %c0_i32_0 : i32, i32
  }
  func.func @transform_14(%arg0: i32) -> (i32, i32) {
    %c0_i32 = arith.constant 0 : i32
    %c0_i32_0 = arith.constant 0 : i32
    %c0_i32_1 = arith.constant 0 : i32
    return %c0_i32, %c0_i32_0 : i32, i32
  }
  func.func @transform_15(%arg0: i32) -> (i32, i32, i32) {
    %c0_i32 = arith.constant 0 : i32
    %c0_i32_0 = arith.constant 0 : i32
    %c0_i32_1 = arith.constant 0 : i32
    return %arg0, %c0_i32, %c0_i32_0 : i32, i32, i32
  }
}

module attributes {stable_mosaic.version = 11 : i64} {
  func.func @mfa_kernel(%arg0: i32, %arg1: memref<1x16x48xf32, #tpu.memory_space<vmem>>, %arg2: memref<48x48xf32, #tpu.memory_space<vmem>>, %arg3: memref<1x48xf32, #tpu.memory_space<vmem>>, %arg4: memref<1x48xf32, #tpu.memory_space<vmem>>, %arg5: memref<1x48xf32, #tpu.memory_space<vmem>>, %arg6: memref<1x16x48xf32, #tpu.memory_space<vmem>>) attributes {dimension_semantics = [#tpu.dimension_semantics<parallel>], iteration_bounds = array<i64: 2>, scalar_prefetch = 0 : i64, scratch_operands = 0 : i64, tpu.core_type = #tpu.core_type<tc>, window_params = [{transform_indices = @transform_0, window_bounds = array<i64: 1, 16, 48>}, {pipeline_mode = #tpu.pipeline_mode<synchronous>, transform_indices = @transform_1, window_bounds = array<i64: 48, 48>}, {pipeline_mode = #tpu.pipeline_mode<synchronous>, transform_indices = @transform_2, window_bounds = array<i64: 1, 48>}, {pipeline_mode = #tpu.pipeline_mode<synchronous>, transform_indices = @transform_3, window_bounds = array<i64: 1, 48>}, {pipeline_mode = #tpu.pipeline_mode<synchronous>, transform_indices = @transform_4, window_bounds = array<i64: 1, 48>}, {transform_indices = @transform_5, window_bounds = array<i64: 1, 16, 48>}]} {
    %c0 = arith.constant 0 : index
    %c0_0 = arith.constant 0 : index
    %c0_1 = arith.constant 0 : index
    %0 = vector.load %arg1[%c0, %c0_0, %c0_1] : memref<1x16x48xf32, #tpu.memory_space<vmem>>, vector<1x16x48xf32>
    %1 = vector.shape_cast %0 : vector<1x16x48xf32> to vector<16x48xf32>
    %c0_2 = arith.constant 0 : index
    %c0_3 = arith.constant 0 : index
    %2 = vector.load %arg2[%c0_2, %c0_3] : memref<48x48xf32, #tpu.memory_space<vmem>>, vector<48x48xf32>
    %cst = arith.constant dense<0.000000e+00> : vector<16x48xf32>
    %3 = tpu.matmul %1, %2, %cst {dimension_numbers = #tpu.dot_dimension_numbers<[1], [0], [0], [1], [0, 0, 1, 1], [], []>} : vector<16x48xf32>, vector<48x48xf32>, vector<16x48xf32> -> vector<16x48xf32>
    %c0_4 = arith.constant 0 : index
    %c0_5 = arith.constant 0 : index
    %4 = vector.load %arg3[%c0_4, %c0_5] : memref<1x48xf32, #tpu.memory_space<vmem>>, vector<1x48xf32>
    %5 = vector.broadcast %4 : vector<1x48xf32> to vector<16x48xf32>
    %6 = arith.addf %3, %5 : vector<16x48xf32>
    %c0_6 = arith.constant 0 : index
    %c0_7 = arith.constant 0 : index
    %7 = vector.load %arg4[%c0_6, %c0_7] : memref<1x48xf32, #tpu.memory_space<vmem>>, vector<1x48xf32>
    %c0_8 = arith.constant 0 : index
    %c0_9 = arith.constant 0 : index
    %8 = vector.load %arg5[%c0_8, %c0_9] : memref<1x48xf32, #tpu.memory_space<vmem>>, vector<1x48xf32>
    %cst_10 = arith.constant dense<0.000000e+00> : vector<16xf32>
    %9 = vector.multi_reduction <add>, %6, %cst_10 [1] : vector<16x48xf32> to vector<16xf32>
    %10 = vector.shape_cast %9 : vector<16xf32> to vector<16x1xf32>
    %cst_11 = arith.constant 4.800000e+01 : f32
    %11 = vector.broadcast %cst_11 : f32 to vector<16x1xf32>
    %12 = arith.divf %10, %11 : vector<16x1xf32>
    %13 = vector.broadcast %12 : vector<16x1xf32> to vector<16x48xf32>
    %14 = arith.subf %6, %13 : vector<16x48xf32>
    %15 = arith.mulf %14, %14 : vector<16x48xf32>
    %cst_12 = arith.constant dense<0.000000e+00> : vector<16xf32>
    %16 = vector.multi_reduction <add>, %15, %cst_12 [1] : vector<16x48xf32> to vector<16xf32>
    %17 = vector.shape_cast %16 : vector<16xf32> to vector<16x1xf32>
    %cst_13 = arith.constant 4.800000e+01 : f32
    %18 = vector.broadcast %cst_13 : f32 to vector<16x1xf32>
    %19 = arith.divf %17, %18 : vector<16x1xf32>
    %cst_14 = arith.constant 9.99999997E-7 : f32
    %20 = vector.broadcast %cst_14 : f32 to vector<16x1xf32>
    %21 = arith.addf %19, %20 : vector<16x1xf32>
    %22 = math.rsqrt %21 : vector<16x1xf32>
    %23 = vector.broadcast %22 : vector<16x1xf32> to vector<16x48xf32>
    %24 = arith.mulf %14, %23 : vector<16x48xf32>
    %25 = vector.broadcast %7 : vector<1x48xf32> to vector<16x48xf32>
    %26 = arith.mulf %24, %25 : vector<16x48xf32>
    %27 = vector.broadcast %8 : vector<1x48xf32> to vector<16x48xf32>
    %28 = arith.addf %26, %27 : vector<16x48xf32>
    %c0_15 = arith.constant 0 : index
    %c0_16 = arith.constant 0 : index
    %c0_17 = arith.constant 0 : index
    %29 = vector.load %arg6[%c0_15, %c0_16, %c0_17] : memref<1x16x48xf32, #tpu.memory_space<vmem>>, vector<1x16x48xf32>
    %30 = vector.shape_cast %29 : vector<1x16x48xf32> to vector<16x48xf32>
    %31 = vector.shape_cast %28 : vector<16x48xf32> to vector<1x16x48xf32>
    tpu.vector_store %arg6[%c0_15, %c0_16, %c0_17], %31 {strides = array<i32>} : memref<1x16x48xf32, #tpu.memory_space<vmem>>, vector<1x16x48xf32>,
    return
  }
  func.func @transform_0(%arg0: i32) -> (i32, i32, i32) {
    %c0_i32 = arith.constant 0 : i32
    %c0_i32_0 = arith.constant 0 : i32
    %c0_i32_1 = arith.constant 0 : i32
    return %arg0, %c0_i32, %c0_i32_0 : i32, i32, i32
  }
  func.func @transform_1(%arg0: i32) -> (i32, i32) {
    %c0_i32 = arith.constant 0 : i32
    %c0_i32_0 = arith.constant 0 : i32
    %c0_i32_1 = arith.constant 0 : i32
    return %c0_i32, %c0_i32_0 : i32, i32
  }
  func.func @transform_2(%arg0: i32) -> (i32, i32) {
    %c0_i32 = arith.constant 0 : i32
    %c0_i32_0 = arith.constant 0 : i32
    %c0_i32_1 = arith.constant 0 : i32
    return %c0_i32, %c0_i32_0 : i32, i32
  }
  func.func @transform_3(%arg0: i32) -> (i32, i32) {
    %c0_i32 = arith.constant 0 : i32
    %c0_i32_0 = arith.constant 0 : i32
    %c0_i32_1 = arith.constant 0 : i32
    return %c0_i32, %c0_i32_0 : i32, i32
  }
  func.func @transform_4(%arg0: i32) -> (i32, i32) {
    %c0_i32 = arith.constant 0 : i32
    %c0_i32_0 = arith.constant 0 : i32
    %c0_i32_1 = arith.constant 0 : i32
    return %c0_i32, %c0_i32_0 : i32, i32
  }
  func.func @transform_5(%arg0: i32) -> (i32, i32, i32) {
    %c0_i32 = arith.constant 0 : i32
    %c0_i32_0 = arith.constant 0 : i32
    %c0_i32_1 = arith.constant 0 : i32
    return %arg0, %c0_i32, %c0_i32_0 : i32, i32, i32
  }
}

</mosaic_0001>

<llo_original>
// kernel: _lambda_.5
$region0: #{_lambda_.5}
  #allocation0 [shape = 'u32[]', space=smem, size = 0x4, offset = 0x4, fixed_abs, tag = 'smem constant byte address 0x4 - core index']
  #allocation1 [shape = 'u32[144,128]{1,0:T(1,128)}', space=vmem, size = 0x12000, scoped, tag = 'internal scratch']
  %s0 = inlined_call_operand.vmem [shape: f32[2,19,8], index: 0, kind: input, shape index: {}]
  %s1 = inlined_call_operand.vmem [shape: f32[4,8,16], index: 1, kind: input, shape index: {}]
  %s2 = inlined_call_operand.vmem [shape: f32[1,16], index: 2, kind: input, shape index: {}]
  %s3 = inlined_call_operand.vmem [shape: f32[1,16], index: 3, kind: input, shape index: {}]
  %s4 = inlined_call_operand.vmem [shape: f32[1,16], index: 4, kind: input, shape index: {}]
  %s5 = inlined_call_operand.vmem [shape: f32[2,16,16], index: 5, kind: output, shape index: {}]
  %s6 = sld [smem:[#allocation0]]
  $region53: #{_lambda_.5} parent=0
    _
  %s8 = ssub.s32 1, %s6
  %s9 = scalar_select 0, %s8, %s6
  loop: start=0, step=1, limit=4
  $region2: #{_lambda_.5} parent=0 // loop_pre_header
    _
  $region3: #{_lambda_.5} parent=0 // loop_header
    %s11 = sphi 0, %s15
    %p12 = scmp.ge.s32.totalorder %s11, 4
    %s21 = sphi 0, %s23
    %s24 = sphi 0, %s21
    %s25 = sphi 0, %s24
    %s41 = sphi 0, %s25
    %s45 = sphi 0, %s45
    %s47 = sphi 0, %s45
    %s48 = sphi 0, %s47
    %s62 = sphi 0, %s48
    %s66 = sphi 0, %s66
    %s68 = sphi 0, %s66
    %s69 = sphi 0, %s68
    %s83 = sphi 0, %s69
    %s87 = sphi 0, %s87
    %s89 = sphi 0, %s87
    %s90 = sphi 0, %s89
    %s104 = sphi 0, %s90
    %s108 = sphi 0, %s108
    %s110 = sphi 0, %s108
    %s111 = sphi 0, %s110
    %s125 = sphi 0, %s111
    %s131 = sphi 0, %s133
    %s134 = sphi 0, %s131
    %s135 = sphi 0, %s134
    %s151 = sphi 0, %s135
  $region4: #{_lambda_.5} parent=0 // loop_header_branch
    %14 = sbr.rel (%p12) target = $region8
  $region5: #{_lambda_.5} parent=0 // loop_body
    %s16 = ssub.s32 %s11, 1
    %s17 = ssub.s32 %s11, 2
    %s18 = sadd.s32 %s11, 1
    %s19 = ssub.s32 %s11, %s18
    %p20 = scmp.eq.s32.totalorder %s19, 0
    %s22 = sadd.s32 %s21, 1
    %s23 = scalar_select %p20, %s21, %s22
    %p26 = pneg %p20
    %p27 = scmp.eq.s32.totalorder %s11, 1
    %p28 = por %p26, %p27
    %p29 = scmp.ne.s32.totalorder %s21, %s24
    %p30 = scmp.eq.s32.totalorder %s11, 0
    %p31 = por %p29, %p30
    %p32 = scmp.ne.s32.totalorder %s21, %s24
    %p33 = scmp.eq.s32.totalorder %s16, 1
    %p34 = por %p32, %p33
    %p35 = scmp.ne.s32.totalorder %s24, %s25
    %p36 = scmp.eq.s32.totalorder %s16, 0
    %p37 = por %p35, %p36
    %p38 = scmp.ne.s32.totalorder %s24, %s25
    %p39 = scmp.eq.s32.totalorder %s17, 1
    %p40 = por %p38, %p39
    %p42 = scmp.ne.s32.totalorder %s25, %s41
    %p43 = scmp.eq.s32.totalorder %s17, 0
    %p44 = por %p42, %p43
    %s46 = sadd.s32 %s45, 1
    %p49 = scmp.eq.s32.totalorder %s11, 1
    %p50 = scmp.ne.s32.totalorder %s45, %s47
    %p51 = scmp.eq.s32.totalorder %s11, 0
    %p52 = por %p50, %p51
    %p53 = scmp.ne.s32.totalorder %s45, %s47
    %p54 = scmp.eq.s32.totalorder %s16, 1
    %p55 = por %p53, %p54
    %p56 = scmp.ne.s32.totalorder %s47, %s48
    %p57 = scmp.eq.s32.totalorder %s16, 0
    %p58 = por %p56, %p57
    %p59 = scmp.ne.s32.totalorder %s47, %s48
    %p60 = scmp.eq.s32.totalorder %s17, 1
    %p61 = por %p59, %p60
    %p63 = scmp.ne.s32.totalorder %s48, %s62
    %p64 = scmp.eq.s32.totalorder %s17, 0
    %p65 = por %p63, %p64
    %s67 = sadd.s32 %s66, 1
    %p70 = scmp.eq.s32.totalorder %s11, 1
    %p71 = scmp.ne.s32.totalorder %s66, %s68
    %p72 = scmp.eq.s32.totalorder %s11, 0
    %p73 = por %p71, %p72
    %p74 = scmp.ne.s32.totalorder %s66, %s68
    %p75 = scmp.eq.s32.totalorder %s16, 1
    %p76 = por %p74, %p75
    %p77 = scmp.ne.s32.totalorder %s68, %s69
    %p78 = scmp.eq.s32.totalorder %s16, 0
    %p79 = por %p77, %p78
    %p80 = scmp.ne.s32.totalorder %s68, %s69
    %p81 = scmp.eq.s32.totalorder %s17, 1
    %p82 = por %p80, %p81
    %p84 = scmp.ne.s32.totalorder %s69, %s83
    %p85 = scmp.eq.s32.totalorder %s17, 0
    %p86 = por %p84, %p85
    %s88 = sadd.s32 %s87, 1
    %p91 = scmp.eq.s32.totalorder %s11, 1
    %p92 = scmp.ne.s32.totalorder %s87, %s89
    %p93 = scmp.eq.s32.totalorder %s11, 0
    %p94 = por %p92, %p93
    %p95 = scmp.ne.s32.totalorder %s87, %s89
    %p96 = scmp.eq.s32.totalorder %s16, 1
    %p97 = por %p95, %p96
    %p98 = scmp.ne.s32.totalorder %s89, %s90
    %p99 = scmp.eq.s32.totalorder %s16, 0
    %p100 = por %p98, %p99
    %p101 = scmp.ne.s32.totalorder %s89, %s90
    %p102 = scmp.eq.s32.totalorder %s17, 1
    %p103 = por %p101, %p102
    %p105 = scmp.ne.s32.totalorder %s90, %s104
    %p106 = scmp.eq.s32.totalorder %s17, 0
    %p107 = por %p105, %p106
    %s109 = sadd.s32 %s108, 1
    %p112 = scmp.eq.s32.totalorder %s11, 1
    %p113 = scmp.ne.s32.totalorder %s108, %s110
    %p114 = scmp.eq.s32.totalorder %s11, 0
    %p115 = por %p113, %p114
    %p116 = scmp.ne.s32.totalorder %s108, %s110
    %p117 = scmp.eq.s32.totalorder %s16, 1
    %p118 = por %p116, %p117
    %p119 = scmp.ne.s32.totalorder %s110, %s111
    %p120 = scmp.eq.s32.totalorder %s16, 0
    %p121 = por %p119, %p120
    %p122 = scmp.ne.s32.totalorder %s110, %s111
    %p123 = scmp.eq.s32.totalorder %s17, 1
    %p124 = por %p122, %p123
    %p126 = scmp.ne.s32.totalorder %s111, %s125
    %p127 = scmp.eq.s32.totalorder %s17, 0
    %p128 = por %p126, %p127
    %s129 = ssub.s32 %s11, %s18
    %p130 = scmp.eq.s32.totalorder %s129, 0
    %s132 = sadd.s32 %s131, 1
    %s133 = scalar_select %p130, %s131, %s132
    %p136 = pneg %p130
    %p137 = scmp.eq.s32.totalorder %s11, 1
    %p138 = por %p136, %p137
    %p139 = scmp.ne.s32.totalorder %s131, %s134
    %p140 = scmp.eq.s32.totalorder %s11, 0
    %p141 = por %p139, %p140
    %p142 = scmp.ne.s32.totalorder %s131, %s134
    %p143 = scmp.eq.s32.totalorder %s16, 1
    %p144 = por %p142, %p143
    %p145 = scmp.ne.s32.totalorder %s134, %s135
    %p146 = scmp.eq.s32.totalorder %s16, 0
    %p147 = por %p145, %p146
    %p148 = scmp.ne.s32.totalorder %s134, %s135
    %p149 = scmp.eq.s32.totalorder %s17, 1
    %p150 = por %p148, %p149
    %p152 = scmp.ne.s32.totalorder %s135, %s151
    %p153 = scmp.eq.s32.totalorder %s17, 0
    %p154 = por %p152, %p153
    %p155 = scmp.le.s32.totalorder 1, %s11
    %p156 = scmp.lt.s32.totalorder %s11, 3
    %p157 = pnand %p155, %p156
    %p158 = pneg %p157
    // Predicated region
    $region9: #{_lambda_.5} parent=5 // pred_check
      _
    $region10: #{_lambda_.5} parent=5 // pred_check_branch
      %160 = sbr.rel (%p157) target = $region12
    $region11: #{_lambda_.5} parent=5 // pred_region
      %s161 = ssub.s32 %s11, 1
      // Predicated region
      $region13: #{_lambda_.5} parent=11 // pred_check
        %p162 = pneg %p58
      $region14: #{_lambda_.5} parent=11 // pred_check_branch
        %164 = sbr.rel (%p162) target = $region16
      $region15: #{_lambda_.5} parent=11 // pred_region
        _
      $region16: #{_lambda_.5} parent=11 // pred_fallthru
        _
      // Predicated region
      $region17: #{_lambda_.5} parent=11 // pred_check
        %p165 = pneg %p79
      $region18: #{_lambda_.5} parent=11 // pred_check_branch
        %167 = sbr.rel (%p165) target = $region20
      $region19: #{_lambda_.5} parent=11 // pred_region
        _
      $region20: #{_lambda_.5} parent=11 // pred_fallthru
        _
      // Predicated region
      $region21: #{_lambda_.5} parent=11 // pred_check
        %p168 = pneg %p100
      $region22: #{_lambda_.5} parent=11 // pred_check_branch
        %170 = sbr.rel (%p168) target = $region24
      $region23: #{_lambda_.5} parent=11 // pred_region
        _
      $region24: #{_lambda_.5} parent=11 // pred_fallthru
        _
      // Predicated region
      $region25: #{_lambda_.5} parent=11 // pred_check
        %p171 = pneg %p121
      $region26: #{_lambda_.5} parent=11 // pred_check_branch
        %173 = sbr.rel (%p171) target = $region28
      $region27: #{_lambda_.5} parent=11 // pred_region
        _
      $region28: #{_lambda_.5} parent=11 // pred_fallthru
        _
    $region12: #{_lambda_.5} parent=5 // pred_fallthru
      _
    %p174 = scmp.lt.s32.totalorder %s11, 2
    // Predicated region
    $region29: #{_lambda_.5} parent=5 // pred_check
      %p175 = pneg %p174
    $region30: #{_lambda_.5} parent=5 // pred_check_branch
      %177 = sbr.rel (%p175) target = $region32
    $region31: #{_lambda_.5} parent=5 // pred_region
      // Predicated region
      $region33: #{_lambda_.5} parent=31 // pred_check
        %p178 = pneg %p31
      $region34: #{_lambda_.5} parent=31 // pred_check_branch
        %180 = sbr.rel (%p178) target = $region36
      $region35: #{_lambda_.5} parent=31 // pred_region
        %p181 = scmp.lt.s32.totalorder %s11, 1
        %s182 = scalar_select %p181, %s11, 1
        %s183 = smul.addr %s182, 3
        %s184 = smul.addr %s183, 8
        %s185 = scalar_lea.vmem %s0, %s184
      $region36: #{_lambda_.5} parent=31 // pred_fallthru
        _
    $region32: #{_lambda_.5} parent=5 // pred_fallthru
      _
    %p186 = scmp.le.s32.totalorder 1, %s11
    %p187 = scmp.lt.s32.totalorder %s11, 3
    %p188 = pnand %p186, %p187
    %p189 = pneg %p188
    // Predicated region
    $region37: #{_lambda_.5} parent=5 // pred_check
      _
    $region38: #{_lambda_.5} parent=5 // pred_check_branch
      %191 = sbr.rel (%p188) target = $region40
    $region39: #{_lambda_.5} parent=5 // pred_region
      %s192 = ssub.s32 %s11, 1
      %p193 = scmp.lt.s32.totalorder %s16, 1
      %s194 = scalar_select %p193, %s16, 1
      %s195 = smul.addr %s194, 3
      %s196 = smul.addr %s195, 8
      %s197 = scalar_lea.vmem %s0, %s196
      %p198 = pneg %p37
      %p199 = pneg %p34
      %p200 = pneg %p58
      %p201 = pneg %p55
      %p202 = pneg %p79
      %p203 = pneg %p76
      %p204 = pneg %p100
      %p205 = pneg %p97
      %p206 = pneg %p121
      %p207 = pneg %p118
      %p208 = pneg %p147
      %p209 = pneg %p144
      %p210 = scmp.lt.s32.totalorder %s16, 1
      %s211 = scalar_select %p210, %s16, 1
      %s212 = smul.addr %s211, 2
      %s213 = smul.addr %s212, 8
      %s214 = scalar_lea.vmem %s5, %s213
      %p215 = scmp.lt.s32.totalorder %s16, 1
      %s216 = scalar_select %p215, %s16, 1
      %s217 = smul.addr %s216, 3
      %s218 = smul.addr %s217, 8
      %s219 = scalar_lea.vmem %s0, %s218
      %p220 = scmp.lt.s32.totalorder %s16, 1
      %s221 = scalar_select %p220, %s16, 1
      %s222 = smul.addr %s221, 2
      %s223 = smul.addr %s222, 8
      %s224 = scalar_lea.vmem %s5, %s223
      %v225 = vld [vmem:[%s219] sm:$0xff]
      %v226 = vld [vmem:[%s219 + $0x8] sm:$0xff]
      %v227 = vld [vmem:[%s219 + $0x10] sm:$0x7]
      %v228 = vld [vmem:[%s2] sm:$0x1]
      %v229 = vld [vmem:[%s1] sm:$0xff]
      %vm230 = vcmask 64512
      %v232 = vsel %vm230, %v225, 0
      %v235 = vsel %vm230, %v226, 0
      %237 = vmatprep.subr.mxu0 0.0
      %238 = vmatpush1.msra.mxu0 0.0
      %239 = vmatprep.subr.mxu0 0.0
      %240 = vmatpush1.msra.mxu0 0.0
      %241 = vmatprep.subr.mxu0 0.0
      %242 = vmatpush1.msra.mxu0 0.0
      %243 = vmatprep.subr.mxu0 0.0
      %244 = vmatpush1.msra.mxu0 0.0
      %245 = vmatprep.subr.mxu0 0.0
      %246 = vmatpush1.msra.mxu0 0.0
      %247 = vmatprep.subr.mxu0 0.0
      %248 = vmatpush1.msra.mxu0 0.0
      %249 = vmatprep.subr.mxu0 0.0
      %250 = vmatpush1.msra.mxu0 0.0
      %251 = vmatprep.subr.mxu0 0.0
      %252 = vmatpush1.msra.mxu0 0.0
      %253 = vmatprep.subr.mxu0 0.0
      %254 = vmatpush1.msra.mxu0 0.0
      %255 = vmatprep.subr.mxu0 0.0
      %256 = vmatpush1.msra.mxu0 0.0
      %257 = vmatprep.subr.mxu0 0.0
      %258 = vmatpush1.msra.mxu0 0.0
      %259 = vmatprep.subr.mxu0 0.0
      %260 = vmatpush1.msra.mxu0 0.0
      %261 = vmatprep.subr.mxu0 0.0
      %262 = vmatpush1.msra.mxu0 0.0
      %263 = vmatprep.subr.mxu0 0.0
      %264 = vmatpush1.msra.mxu0 0.0
      %265 = vmatprep.subr.mxu0 0.0
      %266 = vmatpush1.msra.mxu0 0.0
      %267 = vmatprep.subr.mxu0 0.0
      %268 = vmatpush1.msra.mxu0 %v229
      %269 = vmatprep.subr.mxu0 0.0
      %270 = vmatpush2.msra.mxu0 0.0
      %271 = vmatprep.subr.mxu0 0.0
      %272 = vmatpush2.msra.mxu0 0.0
      %273 = vmatprep.subr.mxu0 0.0
      %274 = vmatpush2.msra.mxu0 0.0
      %275 = vmatprep.subr.mxu0 0.0
      %276 = vmatpush2.msra.mxu0 0.0
      %277 = vmatprep.subr.mxu0 0.0
      %278 = vmatpush2.msra.mxu0 0.0
      %279 = vmatprep.subr.mxu0 0.0
      %280 = vmatpush2.msra.mxu0 0.0
      %281 = vmatprep.subr.mxu0 0.0
      %282 = vmatpush2.msra.mxu0 0.0
      %283 = vmatprep.subr.mxu0 0.0
      %284 = vmatpush2.msra.mxu0 0.0
      %285 = vmatprep.subr.mxu0 0.0
      %286 = vmatpush2.msra.mxu0 0.0
      %287 = vmatprep.subr.mxu0 0.0
      %288 = vmatpush2.msra.mxu0 0.0
      %289 = vmatprep.subr.mxu0 0.0
      %290 = vmatpush2.msra.mxu0 0.0
      %291 = vmatprep.subr.mxu0 0.0
      %292 = vmatpush2.msra.mxu0 0.0
      %293 = vmatprep.subr.mxu0 0.0
      %294 = vmatpush2.msra.mxu0 0.0
      %295 = vmatprep.subr.mxu0 0.0
      %296 = vmatpush2.msra.mxu0 0.0
      %297 = vmatprep.subr.mxu0 0.0
      %298 = vmatpush2.msra.mxu0 0.0
      %299 = vmatprep.subr.mxu0 0.0
      %300 = vmatpush2.msra.mxu0 0.0
      %301 = vmatprep.mubr.f32.mxu0 0.0
      %302 = vmatmul.mubr.f32.gmra.mxu0 %v232
      %v303 = vpop.f32.mrf.mxu0
      %v304 = vadd.f32 0.0, %v303
      %v305 = vpop.f32.mrf.mxu0
      %306 = vmatprep.mubr.f32.mxu0 0.0
      %307 = vmatmul.mubr.f32.gmra.mxu0 %v235
      %v308 = vpop.f32.mrf.mxu0
      %v309 = vadd.f32 0.0, %v308
      %v310 = vpop.f32.mrf.mxu0
      %311 = vdwg.mxu0
      %v313 = vlaneseq
      %v314 = vshrl.u32 %v313, 7
      %v315 = vsub.s32 0, %v314
      %v316 = vrot.slane %v228, %v315
      %v318 = vadd.f32 %v316, %v304
      %v319 = vadd.f32 %v316, %v309
      %s320 = scalar_lea.vmem %s1, 8
      %v321 = vld [vmem:[%s320] sm:$0xff]
      %vm323 = vcmask 1046528
      %v324 = vrot.slane %v225, 1
      %v325 = vrot.slane %v226, 1
      %v326 = vsel %vm323, %v324, %v325
      %v327 = vrot.slane %v227, 1
      %v328 = vsel %vm323, %v325, %v327
      %v329 = vsel %vm230, %v326, 0
      %v331 = vsel %vm230, %v328, 0
      %333 = vmatprep.subr.mxu0 0.0
      %334 = vmatpush1.msra.mxu0 0.0
      %335 = vmatprep.subr.mxu0 0.0
      %336 = vmatpush1.msra.mxu0 0.0
      %337 = vmatprep.subr.mxu0 0.0
      %338 = vmatpush1.msra.mxu0 0.0
      %339 = vmatprep.subr.mxu0 0.0
      %340 = vmatpush1.msra.mxu0 0.0
      %341 = vmatprep.subr.mxu0 0.0
      %342 = vmatpush1.msra.mxu0 0.0
      %343 = vmatprep.subr.mxu0 0.0
      %344 = vmatpush1.msra.mxu0 0.0
      %345 = vmatprep.subr.mxu0 0.0
      %346 = vmatpush1.msra.mxu0 0.0
      %347 = vmatprep.subr.mxu0 0.0
      %348 = vmatpush1.msra.mxu0 0.0
      %349 = vmatprep.subr.mxu0 0.0
      %350 = vmatpush1.msra.mxu0 0.0
      %351 = vmatprep.subr.mxu0 0.0
      %352 = vmatpush1.msra.mxu0 0.0
      %353 = vmatprep.subr.mxu0 0.0
      %354 = vmatpush1.msra.mxu0 0.0
      %355 = vmatprep.subr.mxu0 0.0
      %356 = vmatpush1.msra.mxu0 0.0
      %357 = vmatprep.subr.mxu0 0.0
      %358 = vmatpush1.msra.mxu0 0.0
      %359 = vmatprep.subr.mxu0 0.0
      %360 = vmatpush1.msra.mxu0 0.0
      %361 = vmatprep.subr.mxu0 0.0
      %362 = vmatpush1.msra.mxu0 0.0
      %363 = vmatprep.subr.mxu0 0.0
      %364 = vmatpush1.msra.mxu0 %v321
      %365 = vmatprep.subr.mxu0 0.0
      %366 = vmatpush2.msra.mxu0 0.0
      %367 = vmatprep.subr.mxu0 0.0
      %368 = vmatpush2.msra.mxu0 0.0
      %369 = vmatprep.subr.mxu0 0.0
      %370 = vmatpush2.msra.mxu0 0.0
      %371 = vmatprep.subr.mxu0 0.0
      %372 = vmatpush2.msra.mxu0 0.0
      %373 = vmatprep.subr.mxu0 0.0
      %374 = vmatpush2.msra.mxu0 0.0
      %375 = vmatprep.subr.mxu0 0.0
      %376 = vmatpush2.msra.mxu0 0.0
      %377 = vmatprep.subr.mxu0 0.0
      %378 = vmatpush2.msra.mxu0 0.0
      %379 = vmatprep.subr.mxu0 0.0
      %380 = vmatpush2.msra.mxu0 0.0
      %381 = vmatprep.subr.mxu0 0.0
      %382 = vmatpush2.msra.mxu0 0.0
      %383 = vmatprep.subr.mxu0 0.0
      %384 = vmatpush2.msra.mxu0 0.0
      %385 = vmatprep.subr.mxu0 0.0
      %386 = vmatpush2.msra.mxu0 0.0
      %387 = vmatprep.subr.mxu0 0.0
      %388 = vmatpush2.msra.mxu0 0.0
      %389 = vmatprep.subr.mxu0 0.0
      %390 = vmatpush2.msra.mxu0 0.0
      %391 = vmatprep.subr.mxu0 0.0
      %392 = vmatpush2.msra.mxu0 0.0
      %393 = vmatprep.subr.mxu0 0.0
      %394 = vmatpush2.msra.mxu0 0.0
      %395 = vmatprep.subr.mxu0 0.0
      %396 = vmatpush2.msra.mxu0 0.0
      %397 = vmatprep.mubr.f32.mxu0 0.0
      %398 = vmatmul.mubr.f32.gmra.mxu0 %v329
      %v399 = vpop.f32.mrf.mxu0
      %v400 = vadd.f32 0.0, %v399
      %v401 = vpop.f32.mrf.mxu0
      %402 = vmatprep.mubr.f32.mxu0 0.0
      %403 = vmatmul.mubr.f32.gmra.mxu0 %v331
      %v404 = vpop.f32.mrf.mxu0
      %v405 = vadd.f32 0.0, %v404
      %v406 = vpop.f32.mrf.mxu0
      %407 = vdwg.mxu0
      %v408 = vadd.f32 %v318, %v400
      %v409 = vadd.f32 %v319, %v405
      %s410 = scalar_lea.vmem %s1, 16
      %v411 = vld [vmem:[%s410] sm:$0xff]
      %vm412 = vcmask 1045504
      %v413 = vrot.slane %v225, 2
      %v414 = vrot.slane %v226, 2
      %v415 = vsel %vm412, %v413, %v414
      %v416 = vrot.slane %v227, 2
      %v417 = vsel %vm412, %v414, %v416
      %v418 = vsel %vm230, %v415, 0
      %v420 = vsel %vm230, %v417, 0
      %422 = vmatprep.subr.mxu0 0.0
      %423 = vmatpush1.msra.mxu0 0.0
      %424 = vmatprep.subr.mxu0 0.0
      %425 = vmatpush1.msra.mxu0 0.0
      %426 = vmatprep.subr.mxu0 0.0
      %427 = vmatpush1.msra.mxu0 0.0
      %428 = vmatprep.subr.mxu0 0.0
      %429 = vmatpush1.msra.mxu0 0.0
      %430 = vmatprep.subr.mxu0 0.0
      %431 = vmatpush1.msra.mxu0 0.0
      %432 = vmatprep.subr.mxu0 0.0
      %433 = vmatpush1.msra.mxu0 0.0
      %434 = vmatprep.subr.mxu0 0.0
      %435 = vmatpush1.msra.mxu0 0.0
      %436 = vmatprep.subr.mxu0 0.0
      %437 = vmatpush1.msra.mxu0 0.0
      %438 = vmatprep.subr.mxu0 0.0
      %439 = vmatpush1.msra.mxu0 0.0
      %440 = vmatprep.subr.mxu0 0.0
      %441 = vmatpush1.msra.mxu0 0.0
      %442 = vmatprep.subr.mxu0 0.0
      %443 = vmatpush1.msra.mxu0 0.0
      %444 = vmatprep.subr.mxu0 0.0
      %445 = vmatpush1.msra.mxu0 0.0
      %446 = vmatprep.subr.mxu0 0.0
      %447 = vmatpush1.msra.mxu0 0.0
      %448 = vmatprep.subr.mxu0 0.0
      %449 = vmatpush1.msra.mxu0 0.0
      %450 = vmatprep.subr.mxu0 0.0
      %451 = vmatpush1.msra.mxu0 0.0
      %452 = vmatprep.subr.mxu0 0.0
      %453 = vmatpush1.msra.mxu0 %v411
      %454 = vmatprep.subr.mxu0 0.0
      %455 = vmatpush2.msra.mxu0 0.0
      %456 = vmatprep.subr.mxu0 0.0
      %457 = vmatpush2.msra.mxu0 0.0
      %458 = vmatprep.subr.mxu0 0.0
      %459 = vmatpush2.msra.mxu0 0.0
      %460 = vmatprep.subr.mxu0 0.0
      %461 = vmatpush2.msra.mxu0 0.0
      %462 = vmatprep.subr.mxu0 0.0
      %463 = vmatpush2.msra.mxu0 0.0
      %464 = vmatprep.subr.mxu0 0.0
      %465 = vmatpush2.msra.mxu0 0.0
      %466 = vmatprep.subr.mxu0 0.0
      %467 = vmatpush2.msra.mxu0 0.0
      %468 = vmatprep.subr.mxu0 0.0
      %469 = vmatpush2.msra.mxu0 0.0
      %470 = vmatprep.subr.mxu0 0.0
      %471 = vmatpush2.msra.mxu0 0.0
      %472 = vmatprep.subr.mxu0 0.0
      %473 = vmatpush2.msra.mxu0 0.0
      %474 = vmatprep.subr.mxu0 0.0
      %475 = vmatpush2.msra.mxu0 0.0
      %476 = vmatprep.subr.mxu0 0.0
      %477 = vmatpush2.msra.mxu0 0.0
      %478 = vmatprep.subr.mxu0 0.0
      %479 = vmatpush2.msra.mxu0 0.0
      %480 = vmatprep.subr.mxu0 0.0
      %481 = vmatpush2.msra.mxu0 0.0
      %482 = vmatprep.subr.mxu0 0.0
      %483 = vmatpush2.msra.mxu0 0.0
      %484 = vmatprep.subr.mxu0 0.0
      %485 = vmatpush2.msra.mxu0 0.0
      %486 = vmatprep.mubr.f32.mxu0 0.0
      %487 = vmatmul.mubr.f32.gmra.mxu0 %v418
      %v488 = vpop.f32.mrf.mxu0
      %v489 = vadd.f32 0.0, %v488
      %v490 = vpop.f32.mrf.mxu0
      %491 = vmatprep.mubr.f32.mxu0 0.0
      %492 = vmatmul.mubr.f32.gmra.mxu0 %v420
      %v493 = vpop.f32.mrf.mxu0
      %v494 = vadd.f32 0.0, %v493
      %v495 = vpop.f32.mrf.mxu0
      %496 = vdwg.mxu0
      %v497 = vadd.f32 %v408, %v489
      %v498 = vadd.f32 %v409, %v494
      %s499 = scalar_lea.vmem %s1, 24
      %v500 = vld [vmem:[%s499] sm:$0xff]
      %vm501 = vcmask 1044480
      %v502 = vrot.slane %v225, 3
      %v503 = vrot.slane %v226, 3
      %v504 = vsel %vm501, %v502, %v503
      %v505 = vrot.slane %v227, 3
      %v506 = vsel %vm501, %v503, %v505
      %v507 = vsel %vm230, %v504, 0
      %v509 = vsel %vm230, %v506, 0
      %511 = vmatprep.subr.mxu0 0.0
      %512 = vmatpush1.msra.mxu0 0.0
      %513 = vmatprep.subr.mxu0 0.0
      %514 = vmatpush1.msra.mxu0 0.0
      %515 = vmatprep.subr.mxu0 0.0
      %516 = vmatpush1.msra.mxu0 0.0
      %517 = vmatprep.subr.mxu0 0.0
      %518 = vmatpush1.msra.mxu0 0.0
      %519 = vmatprep.subr.mxu0 0.0
      %520 = vmatpush1.msra.mxu0 0.0
      %521 = vmatprep.subr.mxu0 0.0
      %522 = vmatpush1.msra.mxu0 0.0
      %523 = vmatprep.subr.mxu0 0.0
      %524 = vmatpush1.msra.mxu0 0.0
      %525 = vmatprep.subr.mxu0 0.0
      %526 = vmatpush1.msra.mxu0 0.0
      %527 = vmatprep.subr.mxu0 0.0
      %528 = vmatpush1.msra.mxu0 0.0
      %529 = vmatprep.subr.mxu0 0.0
      %530 = vmatpush1.msra.mxu0 0.0
      %531 = vmatprep.subr.mxu0 0.0
      %532 = vmatpush1.msra.mxu0 0.0
      %533 = vmatprep.subr.mxu0 0.0
      %534 = vmatpush1.msra.mxu0 0.0
      %535 = vmatprep.subr.mxu0 0.0
      %536 = vmatpush1.msra.mxu0 0.0
      %537 = vmatprep.subr.mxu0 0.0
      %538 = vmatpush1.msra.mxu0 0.0
      %539 = vmatprep.subr.mxu0 0.0
      %540 = vmatpush1.msra.mxu0 0.0
      %541 = vmatprep.subr.mxu0 0.0
      %542 = vmatpush1.msra.mxu0 %v500
      %543 = vmatprep.subr.mxu0 0.0
      %544 = vmatpush2.msra.mxu0 0.0
      %545 = vmatprep.subr.mxu0 0.0
      %546 = vmatpush2.msra.mxu0 0.0
      %547 = vmatprep.subr.mxu0 0.0
      %548 = vmatpush2.msra.mxu0 0.0
      %549 = vmatprep.subr.mxu0 0.0
      %550 = vmatpush2.msra.mxu0 0.0
      %551 = vmatprep.subr.mxu0 0.0
      %552 = vmatpush2.msra.mxu0 0.0
      %553 = vmatprep.subr.mxu0 0.0
      %554 = vmatpush2.msra.mxu0 0.0
      %555 = vmatprep.subr.mxu0 0.0
      %556 = vmatpush2.msra.mxu0 0.0
      %557 = vmatprep.subr.mxu0 0.0
      %558 = vmatpush2.msra.mxu0 0.0
      %559 = vmatprep.subr.mxu0 0.0
      %560 = vmatpush2.msra.mxu0 0.0
      %561 = vmatprep.subr.mxu0 0.0
      %562 = vmatpush2.msra.mxu0 0.0
      %563 = vmatprep.subr.mxu0 0.0
      %564 = vmatpush2.msra.mxu0 0.0
      %565 = vmatprep.subr.mxu0 0.0
      %566 = vmatpush2.msra.mxu0 0.0
      %567 = vmatprep.subr.mxu0 0.0
      %568 = vmatpush2.msra.mxu0 0.0
      %569 = vmatprep.subr.mxu0 0.0
      %570 = vmatpush2.msra.mxu0 0.0
      %571 = vmatprep.subr.mxu0 0.0
      %572 = vmatpush2.msra.mxu0 0.0
      %573 = vmatprep.subr.mxu0 0.0
      %574 = vmatpush2.msra.mxu0 0.0
      %575 = vmatprep.mubr.f32.mxu0 0.0
      %576 = vmatmul.mubr.f32.gmra.mxu0 %v507
      %v577 = vpop.f32.mrf.mxu0
      %v578 = vadd.f32 0.0, %v577
      %v579 = vpop.f32.mrf.mxu0
      %580 = vmatprep.mubr.f32.mxu0 0.0
      %581 = vmatmul.mubr.f32.gmra.mxu0 %v509
      %v582 = vpop.f32.mrf.mxu0
      %v583 = vadd.f32 0.0, %v582
      %v584 = vpop.f32.mrf.mxu0
      %585 = vdwg.mxu0
      %v586 = vadd.f32 %v497, %v578
      %v587 = vadd.f32 %v498, %v583
      %v588 = vld [vmem:[%s3] sm:$0x1]
      %v589 = vld [vmem:[%s4] sm:$0x1]
      %vm590 = vcmask 130048
      %v591 = vsel %vm590, %v586, 0.0
      %592 = vadd.xlane.f32.xlu0 %v591
      %v593 = vpop.xlane.xlu0 %592
      %v594 = vsel %vm590, %v587, 0.0
      %595 = vadd.xlane.f32.xlu0 %v594
      %v596 = vpop.xlane.xlu0 %595
      %v597 = vrcp.pop 16.0
      %v598 = vmul.f32 %v593, %v597
      %v599 = vmul.f32 %v596, %v597
      %v600 = vsub.f32 %v586, %v598
      %v601 = vsub.f32 %v587, %v599
      %v602 = vmul.f32 %v600, %v600
      %v603 = vmul.f32 %v601, %v601
      %v604 = vsel %vm590, %v602, 0.0
      %605 = vadd.xlane.f32.xlu0 %v604
      %v606 = vpop.xlane.xlu0 %605
      %v607 = vsel %vm590, %v603, 0.0
      %608 = vadd.xlane.f32.xlu0 %v607
      %v609 = vpop.xlane.xlu0 %608
      %v610 = vmul.f32 %v606, %v597
      %v611 = vmul.f32 %v609, %v597
      %v612 = vadd.f32 %v610, 1e-06
      %v613 = vadd.f32 %v611, 1e-06
      %v614 = vrsqrt.pop %v612
      %v615 = vrsqrt.pop %v613
      %v616 = vmul.f32 %v600, %v614
      %v617 = vmul.f32 %v601, %v615
      %v619 = vlaneseq
      %v620 = vshrl.u32 %v619, 7
      %v621 = vsub.s32 0, %v620
      %v622 = vrot.slane %v588, %v621
      %v624 = vmul.f32 %v616, %v622
      %v625 = vmul.f32 %v617, %v622
      %v627 = vlaneseq
      %v628 = vshrl.u32 %v627, 7
      %v629 = vsub.s32 0, %v628
      %v630 = vrot.slane %v589, %v629
      %v632 = vadd.f32 %v624, %v630
      %v633 = vadd.f32 %v625, %v630
      %634 = vst.msk [vmem:[%s224] sm:$0xff] %vm590, %v632
      %635 = vst.msk [vmem:[%s224 + $0x8] sm:$0xff] %vm590, %v633
      %p636 = scmp.lt.s32.totalorder %s16, 1
      %s637 = scalar_select %p636, %s16, 1
      %s638 = smul.addr %s637, 2
      %s639 = smul.addr %s638, 8
      %s640 = scalar_lea.vmem %s5, %s639
      // Predicated region
      $region41: #{_lambda_.5} parent=39 // pred_check
        %p641 = pneg %p144
      $region42: #{_lambda_.5} parent=39 // pred_check_branch
        %643 = sbr.rel (%p641) target = $region44
      $region43: #{_lambda_.5} parent=39 // pred_region
        _
      $region44: #{_lambda_.5} parent=39 // pred_fallthru
        _
    $region40: #{_lambda_.5} parent=5 // pred_fallthru
      _
    %p644 = scmp.le.s32.totalorder 2, %s11
    // Predicated region
    $region45: #{_lambda_.5} parent=5 // pred_check
      %p645 = pneg %p644
    $region46: #{_lambda_.5} parent=5 // pred_check_branch
      %647 = sbr.rel (%p645) target = $region48
    $region47: #{_lambda_.5} parent=5 // pred_region
      %s648 = ssub.s32 %s11, 2
      // Predicated region
      $region49: #{_lambda_.5} parent=47 // pred_check
        %p649 = pneg %p150
      $region50: #{_lambda_.5} parent=47 // pred_check_branch
        %651 = sbr.rel (%p649) target = $region52
      $region51: #{_lambda_.5} parent=47 // pred_region
        %p652 = scmp.lt.s32.totalorder %s17, 1
        %s653 = scalar_select %p652, %s17, 1
        %s654 = smul.addr %s653, 2
        %s655 = smul.addr %s654, 8
        %s656 = scalar_lea.vmem %s5, %s655
      $region52: #{_lambda_.5} parent=47 // pred_fallthru
        _
    $region48: #{_lambda_.5} parent=5 // pred_fallthru
      _
  $region6: #{_lambda_.5} parent=0 // loop_footer
    %s15 = sadd.s32 1, %s11
  $region7: #{_lambda_.5} parent=0 // loop_footer_branch
    %10 = sbr.rel target = $region3
  $region8: #{_lambda_.5} parent=0 // loop_exit
    _

// kernel: _lambda_.9
$region0: #{_lambda_.9}
  #allocation0 [shape = 'u32[]', space=smem, size = 0x4, offset = 0x4, fixed_abs, tag = 'smem constant byte address 0x4 - core index']
  #allocation1 [shape = 'u32[144,128]{1,0:T(1,128)}', space=vmem, size = 0x12000, scoped, tag = 'internal scratch']
  %s0 = inlined_call_operand.vmem [shape: f32[2,16,48], index: 0, kind: input, shape index: {}]
  %s1 = inlined_call_operand.vmem [shape: f32[48,48], index: 1, kind: input, shape index: {}]
  %s2 = inlined_call_operand.vmem [shape: f32[1,48], index: 2, kind: input, shape index: {}]
  %s3 = inlined_call_operand.vmem [shape: f32[1,48], index: 3, kind: input, shape index: {}]
  %s4 = inlined_call_operand.vmem [shape: f32[1,48], index: 4, kind: input, shape index: {}]
  %s5 = inlined_call_operand.hbm [shape: f32[2,16,48], index: 5, kind: output, shape index: {}]
  %s6 = sld [smem:[#allocation0]]
  $region53: #{_lambda_.9} parent=0
    _
  %s8 = ssub.s32 1, %s6
  %s9 = scalar_select 0, %s8, %s6
  $region1: #{_lambda_.9} parent=0
    #allocation2 [shape = 'u8[16384]{0}', space=vmem, size = 0x4000, scoped, tag = 'output window, operand 0']
    #allocation3 [shape = 's32[2]{0}', space=sflag, size = 0x8, scoped, tag = 'scoped memory for _lambda_.9']
    %10 = vsyncpa [#allocation3], 0
    %s11 = scalar_lea.sflag [#allocation3], 1
    %12 = vsyncpa %s11, 0
    loop: start=0, step=1, limit=4
    $region2: #{_lambda_.9} parent=1 // loop_pre_header
      _
    $region3: #{_lambda_.9} parent=1 // loop_header
      %s14 = sphi 0, %s18
      %p15 = scmp.ge.s32.totalorder %s14, 4
      %s24 = sphi 0, %s26
      %s27 = sphi 0, %s24
      %s28 = sphi 0, %s27
      %s44 = sphi 0, %s28
      %s48 = sphi 0, %s48
      %s50 = sphi 0, %s48
      %s51 = sphi 0, %s50
      %s65 = sphi 0, %s51
      %s69 = sphi 0, %s69
      %s71 = sphi 0, %s69
      %s72 = sphi 0, %s71
      %s86 = sphi 0, %s72
      %s90 = sphi 0, %s90
      %s92 = sphi 0, %s90
      %s93 = sphi 0, %s92
      %s107 = sphi 0, %s93
      %s111 = sphi 0, %s111
      %s113 = sphi 0, %s111
      %s114 = sphi 0, %s113
      %s128 = sphi 0, %s114
      %s134 = sphi 0, %s136
      %s137 = sphi 0, %s134
      %s138 = sphi 0, %s137
      %s154 = sphi 0, %s138
    $region4: #{_lambda_.9} parent=1 // loop_header_branch
      %17 = sbr.rel (%p15) target = $region8
    $region5: #{_lambda_.9} parent=1 // loop_body
      %s19 = ssub.s32 %s14, 1
      %s20 = ssub.s32 %s14, 2
      %s21 = sadd.s32 %s14, 1
      %s22 = ssub.s32 %s14, %s21
      %p23 = scmp.eq.s32.totalorder %s22, 0
      %s25 = sadd.s32 %s24, 1
      %s26 = scalar_select %p23, %s24, %s25
      %p29 = pneg %p23
      %p30 = scmp.eq.s32.totalorder %s14, 1
      %p31 = por %p29, %p30
      %p32 = scmp.ne.s32.totalorder %s24, %s27
      %p33 = scmp.eq.s32.totalorder %s14, 0
      %p34 = por %p32, %p33
      %p35 = scmp.ne.s32.totalorder %s24, %s27
      %p36 = scmp.eq.s32.totalorder %s19, 1
      %p37 = por %p35, %p36
      %p38 = scmp.ne.s32.totalorder %s27, %s28
      %p39 = scmp.eq.s32.totalorder %s19, 0
      %p40 = por %p38, %p39
      %p41 = scmp.ne.s32.totalorder %s27, %s28
      %p42 = scmp.eq.s32.totalorder %s20, 1
      %p43 = por %p41, %p42
      %p45 = scmp.ne.s32.totalorder %s28, %s44
      %p46 = scmp.eq.s32.totalorder %s20, 0
      %p47 = por %p45, %p46
      %s49 = sadd.s32 %s48, 1
      %p52 = scmp.eq.s32.totalorder %s14, 1
      %p53 = scmp.ne.s32.totalorder %s48, %s50
      %p54 = scmp.eq.s32.totalorder %s14, 0
      %p55 = por %p53, %p54
      %p56 = scmp.ne.s32.totalorder %s48, %s50
      %p57 = scmp.eq.s32.totalorder %s19, 1
      %p58 = por %p56, %p57
      %p59 = scmp.ne.s32.totalorder %s50, %s51
      %p60 = scmp.eq.s32.totalorder %s19, 0
      %p61 = por %p59, %p60
      %p62 = scmp.ne.s32.totalorder %s50, %s51
      %p63 = scmp.eq.s32.totalorder %s20, 1
      %p64 = por %p62, %p63
      %p66 = scmp.ne.s32.totalorder %s51, %s65
      %p67 = scmp.eq.s32.totalorder %s20, 0
      %p68 = por %p66, %p67
      %s70 = sadd.s32 %s69, 1
      %p73 = scmp.eq.s32.totalorder %s14, 1
      %p74 = scmp.ne.s32.totalorder %s69, %s71
      %p75 = scmp.eq.s32.totalorder %s14, 0
      %p76 = por %p74, %p75
      %p77 = scmp.ne.s32.totalorder %s69, %s71
      %p78 = scmp.eq.s32.totalorder %s19, 1
      %p79 = por %p77, %p78
      %p80 = scmp.ne.s32.totalorder %s71, %s72
      %p81 = scmp.eq.s32.totalorder %s19, 0
      %p82 = por %p80, %p81
      %p83 = scmp.ne.s32.totalorder %s71, %s72
      %p84 = scmp.eq.s32.totalorder %s20, 1
      %p85 = por %p83, %p84
      %p87 = scmp.ne.s32.totalorder %s72, %s86
      %p88 = scmp.eq.s32.totalorder %s20, 0
      %p89 = por %p87, %p88
      %s91 = sadd.s32 %s90, 1
      %p94 = scmp.eq.s32.totalorder %s14, 1
      %p95 = scmp.ne.s32.totalorder %s90, %s92
      %p96 = scmp.eq.s32.totalorder %s14, 0
      %p97 = por %p95, %p96
      %p98 = scmp.ne.s32.totalorder %s90, %s92
      %p99 = scmp.eq.s32.totalorder %s19, 1
      %p100 = por %p98, %p99
      %p101 = scmp.ne.s32.totalorder %s92, %s93
      %p102 = scmp.eq.s32.totalorder %s19, 0
      %p103 = por %p101, %p102
      %p104 = scmp.ne.s32.totalorder %s92, %s93
      %p105 = scmp.eq.s32.totalorder %s20, 1
      %p106 = por %p104, %p105
      %p108 = scmp.ne.s32.totalorder %s93, %s107
      %p109 = scmp.eq.s32.totalorder %s20, 0
      %p110 = por %p108, %p109
      %s112 = sadd.s32 %s111, 1
      %p115 = scmp.eq.s32.totalorder %s14, 1
      %p116 = scmp.ne.s32.totalorder %s111, %s113
      %p117 = scmp.eq.s32.totalorder %s14, 0
      %p118 = por %p116, %p117
      %p119 = scmp.ne.s32.totalorder %s111, %s113
      %p120 = scmp.eq.s32.totalorder %s19, 1
      %p121 = por %p119, %p120
      %p122 = scmp.ne.s32.totalorder %s113, %s114
      %p123 = scmp.eq.s32.totalorder %s19, 0
      %p124 = por %p122, %p123
      %p125 = scmp.ne.s32.totalorder %s113, %s114
      %p126 = scmp.eq.s32.totalorder %s20, 1
      %p127 = por %p125, %p126
      %p129 = scmp.ne.s32.totalorder %s114, %s128
      %p130 = scmp.eq.s32.totalorder %s20, 0
      %p131 = por %p129, %p130
      %s132 = ssub.s32 %s14, %s21
      %p133 = scmp.eq.s32.totalorder %s132, 0
      %s135 = sadd.s32 %s134, 1
      %s136 = scalar_select %p133, %s134, %s135
      %p139 = pneg %p133
      %p140 = scmp.eq.s32.totalorder %s14, 1
      %p141 = por %p139, %p140
      %p142 = scmp.ne.s32.totalorder %s134, %s137
      %p143 = scmp.eq.s32.totalorder %s14, 0
      %p144 = por %p142, %p143
      %p145 = scmp.ne.s32.totalorder %s134, %s137
      %p146 = scmp.eq.s32.totalorder %s19, 1
      %p147 = por %p145, %p146
      %p148 = scmp.ne.s32.totalorder %s137, %s138
      %p149 = scmp.eq.s32.totalorder %s19, 0
      %p150 = por %p148, %p149
      %p151 = scmp.ne.s32.totalorder %s137, %s138
      %p152 = scmp.eq.s32.totalorder %s20, 1
      %p153 = por %p151, %p152
      %p155 = scmp.ne.s32.totalorder %s138, %s154
      %p156 = scmp.eq.s32.totalorder %s20, 0
      %p157 = por %p155, %p156
      %p158 = scmp.le.s32.totalorder 1, %s14
      %p159 = scmp.lt.s32.totalorder %s14, 3
      %p160 = pnand %p158, %p159
      %p161 = pneg %p160
      // Predicated region
      $region9: #{_lambda_.9} parent=5 // pred_check
        _
      $region10: #{_lambda_.9} parent=5 // pred_check_branch
        %163 = sbr.rel (%p160) target = $region12
      $region11: #{_lambda_.9} parent=5 // pred_region
        %s164 = ssub.s32 %s14, 1
        // Predicated region
        $region13: #{_lambda_.9} parent=11 // pred_check
          %p165 = pneg %p61
        $region14: #{_lambda_.9} parent=11 // pred_check_branch
          %167 = sbr.rel (%p165) target = $region16
        $region15: #{_lambda_.9} parent=11 // pred_region
          _
        $region16: #{_lambda_.9} parent=11 // pred_fallthru
          _
        // Predicated region
        $region17: #{_lambda_.9} parent=11 // pred_check
          %p168 = pneg %p82
        $region18: #{_lambda_.9} parent=11 // pred_check_branch
          %170 = sbr.rel (%p168) target = $region20
        $region19: #{_lambda_.9} parent=11 // pred_region
          _
        $region20: #{_lambda_.9} parent=11 // pred_fallthru
          _
        // Predicated region
        $region21: #{_lambda_.9} parent=11 // pred_check
          %p171 = pneg %p103
        $region22: #{_lambda_.9} parent=11 // pred_check_branch
          %173 = sbr.rel (%p171) target = $region24
        $region23: #{_lambda_.9} parent=11 // pred_region
          _
        $region24: #{_lambda_.9} parent=11 // pred_fallthru
          _
        // Predicated region
        $region25: #{_lambda_.9} parent=11 // pred_check
          %p174 = pneg %p124
        $region26: #{_lambda_.9} parent=11 // pred_check_branch
          %176 = sbr.rel (%p174) target = $region28
        $region27: #{_lambda_.9} parent=11 // pred_region
          _
        $region28: #{_lambda_.9} parent=11 // pred_fallthru
          _
      $region12: #{_lambda_.9} parent=5 // pred_fallthru
        _
      %p177 = scmp.lt.s32.totalorder %s14, 2
      // Predicated region
      $region29: #{_lambda_.9} parent=5 // pred_check
        %p178 = pneg %p177
      $region30: #{_lambda_.9} parent=5 // pred_check_branch
        %180 = sbr.rel (%p178) target = $region32
      $region31: #{_lambda_.9} parent=5 // pred_region
        // Predicated region
        $region33: #{_lambda_.9} parent=31 // pred_check
          %p181 = pneg %p34
        $region34: #{_lambda_.9} parent=31 // pred_check_branch
          %183 = sbr.rel (%p181) target = $region36
        $region35: #{_lambda_.9} parent=31 // pred_region
          %p184 = scmp.lt.s32.totalorder %s14, 1
          %s185 = scalar_select %p184, %s14, 1
          %s186 = smul.addr %s185, 2
          %s187 = smul.addr %s186, 8
          %s188 = scalar_lea.vmem %s0, %s187
        $region36: #{_lambda_.9} parent=31 // pred_fallthru
          _
      $region32: #{_lambda_.9} parent=5 // pred_fallthru
        _
      %p189 = scmp.le.s32.totalorder 1, %s14
      %p190 = scmp.lt.s32.totalorder %s14, 3
      %p191 = pnand %p189, %p190
      %p192 = pneg %p191
      // Predicated region
      $region37: #{_lambda_.9} parent=5 // pred_check
        _
      $region38: #{_lambda_.9} parent=5 // pred_check_branch
        %194 = sbr.rel (%p191) target = $region40
      $region39: #{_lambda_.9} parent=5 // pred_region
        %s195 = ssub.s32 %s14, 1
        %p196 = scmp.lt.s32.totalorder %s19, 1
        %s197 = scalar_select %p196, %s19, 1
        %s198 = smul.addr %s197, 2
        %s199 = smul.addr %s198, 8
        %s200 = scalar_lea.vmem %s0, %s199
        %p201 = pneg %p40
        %p202 = pneg %p37
        %p203 = pneg %p61
        %p204 = pneg %p58
        %p205 = pneg %p82
        %p206 = pneg %p79
        %p207 = pneg %p103
        %p208 = pneg %p100
        %p209 = pneg %p124
        %p210 = pneg %p121
        %p211 = pneg %p150
        %p212 = pneg %p147
        %s213 = sand.u32 %s137, 1
        %s214 = scalar_lea.sflag [#allocation3], %s213
        %s215 = sand.u32 %s137, 1
        %s216 = smul.addr %s215, 16
        %s217 = scalar_lea.vmem [#allocation2], %s216
        %p218 = scmp.lt.s32.totalorder %s19, 1
        %s219 = scalar_select %p218, %s19, 1
        %s220 = smul.addr %s219, 2
        %s221 = smul.addr %s220, 8
        %s222 = scalar_lea.vmem %s0, %s221
        %v223 = vld [vmem:[%s222] sm:$0xff]
        %v224 = vld [vmem:[%s222 + $0x8] sm:$0xff]
        %v225 = vld [vmem:[%s1] sm:$0xff]
        %v226 = vld [vmem:[%s1 + $0x8] sm:$0xff]
        %v227 = vld [vmem:[%s1 + $0x10] sm:$0xff]
        %v228 = vld [vmem:[%s1 + $0x18] sm:$0xff]
        %v229 = vld [vmem:[%s1 + $0x20] sm:$0xff]
        %v230 = vld [vmem:[%s1 + $0x28] sm:$0xff]
        %v231 = vld [vmem:[%s2] sm:$0x1]
        %v233 = vlaneseq
        %v234 = vshrl.u32 %v233, 7
        %v235 = vsub.s32 0, %v234
        %v236 = vrot.slane %v231, %v235
        %vm238 = vcmask 392192
        %v240 = vsel %vm238, %v223, 0
        %v243 = vsel %vm238, %v224, 0
        %245 = vmatprep.subr.mxu0 0.0
        %246 = vmatpush1.msra.mxu0 0.0
        %247 = vmatprep.subr.mxu0 0.0
        %248 = vmatpush1.msra.mxu0 0.0
        %249 = vmatprep.subr.mxu0 0.0
        %250 = vmatpush1.msra.mxu0 0.0
        %251 = vmatprep.subr.mxu0 0.0
        %252 = vmatpush1.msra.mxu0 0.0
        %253 = vmatprep.subr.mxu0 0.0
        %254 = vmatpush1.msra.mxu0 0.0
        %255 = vmatprep.subr.mxu0 0.0
        %256 = vmatpush1.msra.mxu0 0.0
        %257 = vmatprep.subr.mxu0 0.0
        %258 = vmatpush1.msra.mxu0 0.0
        %259 = vmatprep.subr.mxu0 0.0
        %260 = vmatpush1.msra.mxu0 0.0
        %261 = vmatprep.subr.mxu0 0.0
        %262 = vmatpush1.msra.mxu0 0.0
        %263 = vmatprep.subr.mxu0 0.0
        %264 = vmatpush1.msra.mxu0 0.0
        %265 = vmatprep.subr.mxu0 0.0
        %266 = vmatpush1.msra.mxu0 %v230
        %267 = vmatprep.subr.mxu0 0.0
        %268 = vmatpush1.msra.mxu0 %v229
        %269 = vmatprep.subr.mxu0 0.0
        %270 = vmatpush1.msra.mxu0 %v228
        %271 = vmatprep.subr.mxu0 0.0
        %272 = vmatpush1.msra.mxu0 %v227
        %273 = vmatprep.subr.mxu0 0.0
        %274 = vmatpush1.msra.mxu0 %v226
        %275 = vmatprep.subr.mxu0 0.0
        %276 = vmatpush1.msra.mxu0 %v225
        %277 = vmatprep.subr.mxu0 0.0
        %278 = vmatpush2.msra.mxu0 0.0
        %279 = vmatprep.subr.mxu0 0.0
        %280 = vmatpush2.msra.mxu0 0.0
        %281 = vmatprep.subr.mxu0 0.0
        %282 = vmatpush2.msra.mxu0 0.0
        %283 = vmatprep.subr.mxu0 0.0
        %284 = vmatpush2.msra.mxu0 0.0
        %285 = vmatprep.subr.mxu0 0.0
        %286 = vmatpush2.msra.mxu0 0.0
        %287 = vmatprep.subr.mxu0 0.0
        %288 = vmatpush2.msra.mxu0 0.0
        %289 = vmatprep.subr.mxu0 0.0
        %290 = vmatpush2.msra.mxu0 0.0
        %291 = vmatprep.subr.mxu0 0.0
        %292 = vmatpush2.msra.mxu0 0.0
        %293 = vmatprep.subr.mxu0 0.0
        %294 = vmatpush2.msra.mxu0 0.0
        %295 = vmatprep.subr.mxu0 0.0
        %296 = vmatpush2.msra.mxu0 0.0
        %297 = vmatprep.subr.mxu0 0.0
        %298 = vmatpush2.msra.mxu0 0.0
        %299 = vmatprep.subr.mxu0 0.0
        %300 = vmatpush2.msra.mxu0 0.0
        %301 = vmatprep.subr.mxu0 0.0
        %302 = vmatpush2.msra.mxu0 0.0
        %303 = vmatprep.subr.mxu0 0.0
        %304 = vmatpush2.msra.mxu0 0.0
        %305 = vmatprep.subr.mxu0 0.0
        %306 = vmatpush2.msra.mxu0 0.0
        %307 = vmatprep.subr.mxu0 0.0
        %308 = vmatpush2.msra.mxu0 0.0
        %309 = vmatprep.mubr.f32.mxu0 0.0
        %310 = vmatmul.mubr.f32.gmra.mxu0 %v240
        %v311 = vpop.f32.mrf.mxu0
        %v312 = vadd.f32 %v236, %v311
        %v313 = vpop.f32.mrf.mxu0
        %314 = vmatprep.mubr.f32.mxu0 0.0
        %315 = vmatmul.mubr.f32.gmra.mxu0 %v243
        %v316 = vpop.f32.mrf.mxu0
        %v317 = vadd.f32 %v236, %v316
        %v318 = vpop.f32.mrf.mxu0
        %319 = vdwg.mxu0
        %v320 = vld [vmem:[%s3] sm:$0x1]
        %v321 = vld [vmem:[%s4] sm:$0x1]
        %v322 = vsel %vm238, %v312, 0.0
        %323 = vadd.xlane.f32.xlu0 %v322
        %v324 = vpop.xlane.xlu0 %323
        %v325 = vsel %vm238, %v317, 0.0
        %326 = vadd.xlane.f32.xlu0 %v325
        %v327 = vpop.xlane.xlu0 %326
        %v328 = vrcp.pop 48.0
        %v329 = vmul.f32 %v324, %v328
        %v330 = vmul.f32 %v327, %v328
        %v331 = vsub.f32 %v312, %v329
        %v332 = vsub.f32 %v317, %v330
        %v333 = vmul.f32 %v331, %v331
        %v334 = vmul.f32 %v332, %v332
        %v335 = vsel %vm238, %v333, 0.0
        %336 = vadd.xlane.f32.xlu0 %v335
        %v337 = vpop.xlane.xlu0 %336
        %v338 = vsel %vm238, %v334, 0.0
        %339 = vadd.xlane.f32.xlu0 %v338
        %v340 = vpop.xlane.xlu0 %339
        %v341 = vmul.f32 %v337, %v328
        %v342 = vmul.f32 %v340, %v328
        %v343 = vadd.f32 %v341, 1e-06
        %v344 = vadd.f32 %v342, 1e-06
        %v345 = vrsqrt.pop %v343
        %v346 = vrsqrt.pop %v344
        %v347 = vmul.f32 %v331, %v345
        %v348 = vmul.f32 %v332, %v346
        %v350 = vlaneseq
        %v351 = vshrl.u32 %v350, 7
        %v352 = vsub.s32 0, %v351
        %v353 = vrot.slane %v320, %v352
        %v355 = vmul.f32 %v347, %v353
        %v356 = vmul.f32 %v348, %v353
        %v358 = vlaneseq
        %v359 = vshrl.u32 %v358, 7
        %v360 = vsub.s32 0, %v359
        %v361 = vrot.slane %v321, %v360
        %v363 = vadd.f32 %v355, %v361
        %v364 = vadd.f32 %v356, %v361
        %365 = vst.msk [vmem:[%s217] sm:$0xff] %vm238, %v363
        %366 = vst.msk [vmem:[%s217 + $0x8] sm:$0xff] %vm238, %v364
        %s367 = sand.u32 %s137, 1
        %s368 = scalar_lea.sflag [#allocation3], %s367
        %s369 = sand.u32 %s137, 1
        %s370 = smul.addr %s369, 16
        %s371 = scalar_lea.vmem [#allocation2], %s370
        // Predicated region
        $region41: #{_lambda_.9} parent=39 // pred_check
          %p372 = pneg %p147
        $region42: #{_lambda_.9} parent=39 // pred_check_branch
          %374 = sbr.rel (%p372) target = $region44
        $region43: #{_lambda_.9} parent=39 // pred_region
          %s376 = ssub.s32 256, 256
          %377 = vsyncadd %s368, %s376
          %s378 = smul.addr %s19, 2
          %s379 = smul.addr %s378, 128
          %s380 = scalar_lea.hbm %s5, %s379
          %s381 = sshll.u32 %s371, 4
          %s382 = int_to_ptr.vmem [resolvable:$true] %s381
          %387 = dma.vmem_to_hbm [thread:$0]  %s382, 256, %s380, %s368, 128, 128, 8
        $region44: #{_lambda_.9} parent=39 // pred_fallthru
          _
      $region40: #{_lambda_.9} parent=5 // pred_fallthru
        _
      %p388 = scmp.le.s32.totalorder 2, %s14
      // Predicated region
      $region45: #{_lambda_.9} parent=5 // pred_check
        %p389 = pneg %p388
      $region46: #{_lambda_.9} parent=5 // pred_check_branch
        %391 = sbr.rel (%p389) target = $region48
      $region47: #{_lambda_.9} parent=5 // pred_region
        %s392 = ssub.s32 %s14, 2
        // Predicated region
        $region49: #{_lambda_.9} parent=47 // pred_check
          %p393 = pneg %p153
        $region50: #{_lambda_.9} parent=47 // pred_check_branch
          %395 = sbr.rel (%p393) target = $region52
        $region51: #{_lambda_.9} parent=47 // pred_region
          %s396 = sand.u32 %s138, 1
          %s397 = scalar_lea.sflag [#allocation3], %s396
          %s398 = sand.u32 %s138, 1
          %s399 = smul.addr %s398, 16
          %s400 = scalar_lea.vmem [#allocation2], %s399
          %401 = dma.done %s397, 256
        $region52: #{_lambda_.9} parent=47 // pred_fallthru
          _
      $region48: #{_lambda_.9} parent=5 // pred_fallthru
        _
    $region6: #{_lambda_.9} parent=1 // loop_footer
      %s18 = sadd.s32 1, %s14
    $region7: #{_lambda_.9} parent=1 // loop_footer_branch
      %13 = sbr.rel target = $region3
    $region8: #{_lambda_.9} parent=1 // loop_exit
      _
    %402 = vsyncpa [#allocation3], 1
    %s403 = scalar_lea.sflag [#allocation3], 1
    %404 = vsyncpa %s403, 1

// kernel: _lambda_.6
$region0: #{_lambda_.6}
  #allocation0 [shape = 'u32[]', space=smem, size = 0x4, offset = 0x4, fixed_abs, tag = 'smem constant byte address 0x4 - core index']
  #allocation1 [shape = 'u32[144,128]{1,0:T(1,128)}', space=vmem, size = 0x12000, scoped, tag = 'internal scratch']
  #allocation2 [shape = 'f32[26,16]{1,0:T(8,128)}', space=vmem, size = 0x4000, scoped, tag = 'scratch operand']
  %s0 = inlined_call_operand.vmem [shape: f32[2,16,16], index: 0, kind: input, shape index: {}]
  %s1 = inlined_call_operand.vmem [shape: f32[16,16], index: 1, kind: input, shape index: {}]
  %s2 = inlined_call_operand.vmem [shape: f32[1,16], index: 2, kind: input, shape index: {}]
  %s3 = inlined_call_operand.vmem [shape: f32[5,16], index: 3, kind: input, shape index: {}]
  %s4 = inlined_call_operand.vmem [shape: f32[1,16], index: 4, kind: input, shape index: {}]
  %s5 = inlined_call_operand.vmem [shape: f32[16,16], index: 5, kind: input, shape index: {}]
  %s6 = inlined_call_operand.vmem [shape: f32[1,16], index: 6, kind: input, shape index: {}]
  %s7 = inlined_call_operand.vmem [shape: f32[1,16], index: 7, kind: input, shape index: {}]
  %s8 = inlined_call_operand.vmem [shape: f32[1,16], index: 8, kind: input, shape index: {}]
  %s9 = inlined_call_operand.vmem [shape: f32[16,64], index: 9, kind: input, shape index: {}]
  %s10 = inlined_call_operand.vmem [shape: f32[1,64], index: 10, kind: input, shape index: {}]
  %s11 = inlined_call_operand.vmem [shape: f32[1,64], index: 11, kind: input, shape index: {}]
  %s12 = inlined_call_operand.vmem [shape: f32[1,64], index: 12, kind: input, shape index: {}]
  %s13 = inlined_call_operand.vmem [shape: f32[64,16], index: 13, kind: input, shape index: {}]
  %s14 = inlined_call_operand.vmem [shape: f32[1,16], index: 14, kind: input, shape index: {}]
  %s15 = inlined_call_operand.vmem [shape: f32[2,16,16], index: 15, kind: output, shape index: {}]
  %s16 = sld [smem:[#allocation0]]
  $region93: #{_lambda_.6} parent=0
    _
  %s18 = ssub.s32 1, %s16
  %s19 = scalar_select 0, %s18, %s16
  loop: start=0, step=1, limit=4
  $region2: #{_lambda_.6} parent=0 // loop_pre_header
    _
  $region3: #{_lambda_.6} parent=0 // loop_header
    %s21 = sphi 0, %s25
    %p22 = scmp.ge.s32.totalorder %s21, 4
    %s31 = sphi 0, %s33
    %s34 = sphi 0, %s31
    %s35 = sphi 0, %s34
    %s51 = sphi 0, %s35
    %s55 = sphi 0, %s55
    %s57 = sphi 0, %s55
    %s58 = sphi 0, %s57
    %s72 = sphi 0, %s58
    %s76 = sphi 0, %s76
    %s78 = sphi 0, %s76
    %s79 = sphi 0, %s78
    %s93 = sphi 0, %s79
    %s97 = sphi 0, %s97
    %s99 = sphi 0, %s97
    %s100 = sphi 0, %s99
    %s114 = sphi 0, %s100
    %s118 = sphi 0, %s118
    %s120 = sphi 0, %s118
    %s121 = sphi 0, %s120
    %s135 = sphi 0, %s121
    %s139 = sphi 0, %s139
    %s141 = sphi 0, %s139
    %s142 = sphi 0, %s141
    %s156 = sphi 0, %s142
    %s160 = sphi 0, %s160
    %s162 = sphi 0, %s160
    %s163 = sphi 0, %s162
    %s177 = sphi 0, %s163
    %s181 = sphi 0, %s181
    %s183 = sphi 0, %s181
    %s184 = sphi 0, %s183
    %s198 = sphi 0, %s184
    %s202 = sphi 0, %s202
    %s204 = sphi 0, %s202
    %s205 = sphi 0, %s204
    %s219 = sphi 0, %s205
    %s223 = sphi 0, %s223
    %s225 = sphi 0, %s223
    %s226 = sphi 0, %s225
    %s240 = sphi 0, %s226
    %s244 = sphi 0, %s244
    %s246 = sphi 0, %s244
    %s247 = sphi 0, %s246
    %s261 = sphi 0, %s247
    %s265 = sphi 0, %s265
    %s267 = sphi 0, %s265
    %s268 = sphi 0, %s267
    %s282 = sphi 0, %s268
    %s286 = sphi 0, %s286
    %s288 = sphi 0, %s286
    %s289 = sphi 0, %s288
    %s303 = sphi 0, %s289
    %s307 = sphi 0, %s307
    %s309 = sphi 0, %s307
    %s310 = sphi 0, %s309
    %s324 = sphi 0, %s310
    %s328 = sphi 0, %s328
    %s330 = sphi 0, %s328
    %s331 = sphi 0, %s330
    %s345 = sphi 0, %s331
    %s351 = sphi 0, %s353
    %s354 = sphi 0, %s351
    %s355 = sphi 0, %s354
    %s371 = sphi 0, %s355
  $region4: #{_lambda_.6} parent=0 // loop_header_branch
    %24 = sbr.rel (%p22) target = $region8
  $region5: #{_lambda_.6} parent=0 // loop_body
    %s26 = ssub.s32 %s21, 1
    %s27 = ssub.s32 %s21, 2
    %s28 = sadd.s32 %s21, 1
    %s29 = ssub.s32 %s21, %s28
    %p30 = scmp.eq.s32.totalorder %s29, 0
    %s32 = sadd.s32 %s31, 1
    %s33 = scalar_select %p30, %s31, %s32
    %p36 = pneg %p30
    %p37 = scmp.eq.s32.totalorder %s21, 1
    %p38 = por %p36, %p37
    %p39 = scmp.ne.s32.totalorder %s31, %s34
    %p40 = scmp.eq.s32.totalorder %s21, 0
    %p41 = por %p39, %p40
    %p42 = scmp.ne.s32.totalorder %s31, %s34
    %p43 = scmp.eq.s32.totalorder %s26, 1
    %p44 = por %p42, %p43
    %p45 = scmp.ne.s32.totalorder %s34, %s35
    %p46 = scmp.eq.s32.totalorder %s26, 0
    %p47 = por %p45, %p46
    %p48 = scmp.ne.s32.totalorder %s34, %s35
    %p49 = scmp.eq.s32.totalorder %s27, 1
    %p50 = por %p48, %p49
    %p52 = scmp.ne.s32.totalorder %s35, %s51
    %p53 = scmp.eq.s32.totalorder %s27, 0
    %p54 = por %p52, %p53
    %s56 = sadd.s32 %s55, 1
    %p59 = scmp.eq.s32.totalorder %s21, 1
    %p60 = scmp.ne.s32.totalorder %s55, %s57
    %p61 = scmp.eq.s32.totalorder %s21, 0
    %p62 = por %p60, %p61
    %p63 = scmp.ne.s32.totalorder %s55, %s57
    %p64 = scmp.eq.s32.totalorder %s26, 1
    %p65 = por %p63, %p64
    %p66 = scmp.ne.s32.totalorder %s57, %s58
    %p67 = scmp.eq.s32.totalorder %s26, 0
    %p68 = por %p66, %p67
    %p69 = scmp.ne.s32.totalorder %s57, %s58
    %p70 = scmp.eq.s32.totalorder %s27, 1
    %p71 = por %p69, %p70
    %p73 = scmp.ne.s32.totalorder %s58, %s72
    %p74 = scmp.eq.s32.totalorder %s27, 0
    %p75 = por %p73, %p74
    %s77 = sadd.s32 %s76, 1
    %p80 = scmp.eq.s32.totalorder %s21, 1
    %p81 = scmp.ne.s32.totalorder %s76, %s78
    %p82 = scmp.eq.s32.totalorder %s21, 0
    %p83 = por %p81, %p82
    %p84 = scmp.ne.s32.totalorder %s76, %s78
    %p85 = scmp.eq.s32.totalorder %s26, 1
    %p86 = por %p84, %p85
    %p87 = scmp.ne.s32.totalorder %s78, %s79
    %p88 = scmp.eq.s32.totalorder %s26, 0
    %p89 = por %p87, %p88
    %p90 = scmp.ne.s32.totalorder %s78, %s79
    %p91 = scmp.eq.s32.totalorder %s27, 1
    %p92 = por %p90, %p91
    %p94 = scmp.ne.s32.totalorder %s79, %s93
    %p95 = scmp.eq.s32.totalorder %s27, 0
    %p96 = por %p94, %p95
    %s98 = sadd.s32 %s97, 1
    %p101 = scmp.eq.s32.totalorder %s21, 1
    %p102 = scmp.ne.s32.totalorder %s97, %s99
    %p103 = scmp.eq.s32.totalorder %s21, 0
    %p104 = por %p102, %p103
    %p105 = scmp.ne.s32.totalorder %s97, %s99
    %p106 = scmp.eq.s32.totalorder %s26, 1
    %p107 = por %p105, %p106
    %p108 = scmp.ne.s32.totalorder %s99, %s100
    %p109 = scmp.eq.s32.totalorder %s26, 0
    %p110 = por %p108, %p109
    %p111 = scmp.ne.s32.totalorder %s99, %s100
    %p112 = scmp.eq.s32.totalorder %s27, 1
    %p113 = por %p111, %p112
    %p115 = scmp.ne.s32.totalorder %s100, %s114
    %p116 = scmp.eq.s32.totalorder %s27, 0
    %p117 = por %p115, %p116
    %s119 = sadd.s32 %s118, 1
    %p122 = scmp.eq.s32.totalorder %s21, 1
    %p123 = scmp.ne.s32.totalorder %s118, %s120
    %p124 = scmp.eq.s32.totalorder %s21, 0
    %p125 = por %p123, %p124
    %p126 = scmp.ne.s32.totalorder %s118, %s120
    %p127 = scmp.eq.s32.totalorder %s26, 1
    %p128 = por %p126, %p127
    %p129 = scmp.ne.s32.totalorder %s120, %s121
    %p130 = scmp.eq.s32.totalorder %s26, 0
    %p131 = por %p129, %p130
    %p132 = scmp.ne.s32.totalorder %s120, %s121
    %p133 = scmp.eq.s32.totalorder %s27, 1
    %p134 = por %p132, %p133
    %p136 = scmp.ne.s32.totalorder %s121, %s135
    %p137 = scmp.eq.s32.totalorder %s27, 0
    %p138 = por %p136, %p137
    %s140 = sadd.s32 %s139, 1
    %p143 = scmp.eq.s32.totalorder %s21, 1
    %p144 = scmp.ne.s32.totalorder %s139, %s141
    %p145 = scmp.eq.s32.totalorder %s21, 0
    %p146 = por %p144, %p145
    %p147 = scmp.ne.s32.totalorder %s139, %s141
    %p148 = scmp.eq.s32.totalorder %s26, 1
    %p149 = por %p147, %p148
    %p150 = scmp.ne.s32.totalorder %s141, %s142
    %p151 = scmp.eq.s32.totalorder %s26, 0
    %p152 = por %p150, %p151
    %p153 = scmp.ne.s32.totalorder %s141, %s142
    %p154 = scmp.eq.s32.totalorder %s27, 1
    %p155 = por %p153, %p154
    %p157 = scmp.ne.s32.totalorder %s142, %s156
    %p158 = scmp.eq.s32.totalorder %s27, 0
    %p159 = por %p157, %p158
    %s161 = sadd.s32 %s160, 1
    %p164 = scmp.eq.s32.totalorder %s21, 1
    %p165 = scmp.ne.s32.totalorder %s160, %s162
    %p166 = scmp.eq.s32.totalorder %s21, 0
    %p167 = por %p165, %p166
    %p168 = scmp.ne.s32.totalorder %s160, %s162
    %p169 = scmp.eq.s32.totalorder %s26, 1
    %p170 = por %p168, %p169
    %p171 = scmp.ne.s32.totalorder %s162, %s163
    %p172 = scmp.eq.s32.totalorder %s26, 0
    %p173 = por %p171, %p172
    %p174 = scmp.ne.s32.totalorder %s162, %s163
    %p175 = scmp.eq.s32.totalorder %s27, 1
    %p176 = por %p174, %p175
    %p178 = scmp.ne.s32.totalorder %s163, %s177
    %p179 = scmp.eq.s32.totalorder %s27, 0
    %p180 = por %p178, %p179
    %s182 = sadd.s32 %s181, 1
    %p185 = scmp.eq.s32.totalorder %s21, 1
    %p186 = scmp.ne.s32.totalorder %s181, %s183
    %p187 = scmp.eq.s32.totalorder %s21, 0
    %p188 = por %p186, %p187
    %p189 = scmp.ne.s32.totalorder %s181, %s183
    %p190 = scmp.eq.s32.totalorder %s26, 1
    %p191 = por %p189, %p190
    %p192 = scmp.ne.s32.totalorder %s183, %s184
    %p193 = scmp.eq.s32.totalorder %s26, 0
    %p194 = por %p192, %p193
    %p195 = scmp.ne.s32.totalorder %s183, %s184
    %p196 = scmp.eq.s32.totalorder %s27, 1
    %p197 = por %p195, %p196
    %p199 = scmp.ne.s32.totalorder %s184, %s198
    %p200 = scmp.eq.s32.totalorder %s27, 0
    %p201 = por %p199, %p200
    %s203 = sadd.s32 %s202, 1
    %p206 = scmp.eq.s32.totalorder %s21, 1
    %p207 = scmp.ne.s32.totalorder %s202, %s204
    %p208 = scmp.eq.s32.totalorder %s21, 0
    %p209 = por %p207, %p208
    %p210 = scmp.ne.s32.totalorder %s202, %s204
    %p211 = scmp.eq.s32.totalorder %s26, 1
    %p212 = por %p210, %p211
    %p213 = scmp.ne.s32.totalorder %s204, %s205
    %p214 = scmp.eq.s32.totalorder %s26, 0
    %p215 = por %p213, %p214
    %p216 = scmp.ne.s32.totalorder %s204, %s205
    %p217 = scmp.eq.s32.totalorder %s27, 1
    %p218 = por %p216, %p217
    %p220 = scmp.ne.s32.totalorder %s205, %s219
    %p221 = scmp.eq.s32.totalorder %s27, 0
    %p222 = por %p220, %p221
    %s224 = sadd.s32 %s223, 1
    %p227 = scmp.eq.s32.totalorder %s21, 1
    %p228 = scmp.ne.s32.totalorder %s223, %s225
    %p229 = scmp.eq.s32.totalorder %s21, 0
    %p230 = por %p228, %p229
    %p231 = scmp.ne.s32.totalorder %s223, %s225
    %p232 = scmp.eq.s32.totalorder %s26, 1
    %p233 = por %p231, %p232
    %p234 = scmp.ne.s32.totalorder %s225, %s226
    %p235 = scmp.eq.s32.totalorder %s26, 0
    %p236 = por %p234, %p235
    %p237 = scmp.ne.s32.totalorder %s225, %s226
    %p238 = scmp.eq.s32.totalorder %s27, 1
    %p239 = por %p237, %p238
    %p241 = scmp.ne.s32.totalorder %s226, %s240
    %p242 = scmp.eq.s32.totalorder %s27, 0
    %p243 = por %p241, %p242
    %s245 = sadd.s32 %s244, 1
    %p248 = scmp.eq.s32.totalorder %s21, 1
    %p249 = scmp.ne.s32.totalorder %s244, %s246
    %p250 = scmp.eq.s32.totalorder %s21, 0
    %p251 = por %p249, %p250
    %p252 = scmp.ne.s32.totalorder %s244, %s246
    %p253 = scmp.eq.s32.totalorder %s26, 1
    %p254 = por %p252, %p253
    %p255 = scmp.ne.s32.totalorder %s246, %s247
    %p256 = scmp.eq.s32.totalorder %s26, 0
    %p257 = por %p255, %p256
    %p258 = scmp.ne.s32.totalorder %s246, %s247
    %p259 = scmp.eq.s32.totalorder %s27, 1
    %p260 = por %p258, %p259
    %p262 = scmp.ne.s32.totalorder %s247, %s261
    %p263 = scmp.eq.s32.totalorder %s27, 0
    %p264 = por %p262, %p263
    %s266 = sadd.s32 %s265, 1
    %p269 = scmp.eq.s32.totalorder %s21, 1
    %p270 = scmp.ne.s32.totalorder %s265, %s267
    %p271 = scmp.eq.s32.totalorder %s21, 0
    %p272 = por %p270, %p271
    %p273 = scmp.ne.s32.totalorder %s265, %s267
    %p274 = scmp.eq.s32.totalorder %s26, 1
    %p275 = por %p273, %p274
    %p276 = scmp.ne.s32.totalorder %s267, %s268
    %p277 = scmp.eq.s32.totalorder %s26, 0
    %p278 = por %p276, %p277
    %p279 = scmp.ne.s32.totalorder %s267, %s268
    %p280 = scmp.eq.s32.totalorder %s27, 1
    %p281 = por %p279, %p280
    %p283 = scmp.ne.s32.totalorder %s268, %s282
    %p284 = scmp.eq.s32.totalorder %s27, 0
    %p285 = por %p283, %p284
    %s287 = sadd.s32 %s286, 1
    %p290 = scmp.eq.s32.totalorder %s21, 1
    %p291 = scmp.ne.s32.totalorder %s286, %s288
    %p292 = scmp.eq.s32.totalorder %s21, 0
    %p293 = por %p291, %p292
    %p294 = scmp.ne.s32.totalorder %s286, %s288
    %p295 = scmp.eq.s32.totalorder %s26, 1
    %p296 = por %p294, %p295
    %p297 = scmp.ne.s32.totalorder %s288, %s289
    %p298 = scmp.eq.s32.totalorder %s26, 0
    %p299 = por %p297, %p298
    %p300 = scmp.ne.s32.totalorder %s288, %s289
    %p301 = scmp.eq.s32.totalorder %s27, 1
    %p302 = por %p300, %p301
    %p304 = scmp.ne.s32.totalorder %s289, %s303
    %p305 = scmp.eq.s32.totalorder %s27, 0
    %p306 = por %p304, %p305
    %s308 = sadd.s32 %s307, 1
    %p311 = scmp.eq.s32.totalorder %s21, 1
    %p312 = scmp.ne.s32.totalorder %s307, %s309
    %p313 = scmp.eq.s32.totalorder %s21, 0
    %p314 = por %p312, %p313
    %p315 = scmp.ne.s32.totalorder %s307, %s309
    %p316 = scmp.eq.s32.totalorder %s26, 1
    %p317 = por %p315, %p316
    %p318 = scmp.ne.s32.totalorder %s309, %s310
    %p319 = scmp.eq.s32.totalorder %s26, 0
    %p320 = por %p318, %p319
    %p321 = scmp.ne.s32.totalorder %s309, %s310
    %p322 = scmp.eq.s32.totalorder %s27, 1
    %p323 = por %p321, %p322
    %p325 = scmp.ne.s32.totalorder %s310, %s324
    %p326 = scmp.eq.s32.totalorder %s27, 0
    %p327 = por %p325, %p326
    %s329 = sadd.s32 %s328, 1
    %p332 = scmp.eq.s32.totalorder %s21, 1
    %p333 = scmp.ne.s32.totalorder %s328, %s330
    %p334 = scmp.eq.s32.totalorder %s21, 0
    %p335 = por %p333, %p334
    %p336 = scmp.ne.s32.totalorder %s328, %s330
    %p337 = scmp.eq.s32.totalorder %s26, 1
    %p338 = por %p336, %p337
    %p339 = scmp.ne.s32.totalorder %s330, %s331
    %p340 = scmp.eq.s32.totalorder %s26, 0
    %p341 = por %p339, %p340
    %p342 = scmp.ne.s32.totalorder %s330, %s331
    %p343 = scmp.eq.s32.totalorder %s27, 1
    %p344 = por %p342, %p343
    %p346 = scmp.ne.s32.totalorder %s331, %s345
    %p347 = scmp.eq.s32.totalorder %s27, 0
    %p348 = por %p346, %p347
    %s349 = ssub.s32 %s21, %s28
    %p350 = scmp.eq.s32.totalorder %s349, 0
    %s352 = sadd.s32 %s351, 1
    %s353 = scalar_select %p350, %s351, %s352
    %p356 = pneg %p350
    %p357 = scmp.eq.s32.totalorder %s21, 1
    %p358 = por %p356, %p357
    %p359 = scmp.ne.s32.totalorder %s351, %s354
    %p360 = scmp.eq.s32.totalorder %s21, 0
    %p361 = por %p359, %p360
    %p362 = scmp.ne.s32.totalorder %s351, %s354
    %p363 = scmp.eq.s32.totalorder %s26, 1
    %p364 = por %p362, %p363
    %p365 = scmp.ne.s32.totalorder %s354, %s355
    %p366 = scmp.eq.s32.totalorder %s26, 0
    %p367 = por %p365, %p366
    %p368 = scmp.ne.s32.totalorder %s354, %s355
    %p369 = scmp.eq.s32.totalorder %s27, 1
    %p370 = por %p368, %p369
    %p372 = scmp.ne.s32.totalorder %s355, %s371
    %p373 = scmp.eq.s32.totalorder %s27, 0
    %p374 = por %p372, %p373
    %p375 = scmp.le.s32.totalorder 1, %s21
    %p376 = scmp.lt.s32.totalorder %s21, 3
    %p377 = pnand %p375, %p376
    %p378 = pneg %p377
    // Predicated region
    $region9: #{_lambda_.6} parent=5 // pred_check
      _
    $region10: #{_lambda_.6} parent=5 // pred_check_branch
      %380 = sbr.rel (%p377) target = $region12
    $region11: #{_lambda_.6} parent=5 // pred_region
      %s381 = ssub.s32 %s21, 1
      // Predicated region
      $region13: #{_lambda_.6} parent=11 // pred_check
        %p382 = pneg %p68
      $region14: #{_lambda_.6} parent=11 // pred_check_branch
        %384 = sbr.rel (%p382) target = $region16
      $region15: #{_lambda_.6} parent=11 // pred_region
        _
      $region16: #{_lambda_.6} parent=11 // pred_fallthru
        _
      // Predicated region
      $region17: #{_lambda_.6} parent=11 // pred_check
        %p385 = pneg %p89
      $region18: #{_lambda_.6} parent=11 // pred_check_branch
        %387 = sbr.rel (%p385) target = $region20
      $region19: #{_lambda_.6} parent=11 // pred_region
        _
      $region20: #{_lambda_.6} parent=11 // pred_fallthru
        _
      // Predicated region
      $region21: #{_lambda_.6} parent=11 // pred_check
        %p388 = pneg %p110
      $region22: #{_lambda_.6} parent=11 // pred_check_branch
        %390 = sbr.rel (%p388) target = $region24
      $region23: #{_lambda_.6} parent=11 // pred_region
        _
      $region24: #{_lambda_.6} parent=11 // pred_fallthru
        _
      // Predicated region
      $region25: #{_lambda_.6} parent=11 // pred_check
        %p391 = pneg %p131
      $region26: #{_lambda_.6} parent=11 // pred_check_branch
        %393 = sbr.rel (%p391) target = $region28
      $region27: #{_lambda_.6} parent=11 // pred_region
        _
      $region28: #{_lambda_.6} parent=11 // pred_fallthru
        _
      // Predicated region
      $region29: #{_lambda_.6} parent=11 // pred_check
        %p394 = pneg %p152
      $region30: #{_lambda_.6} parent=11 // pred_check_branch
        %396 = sbr.rel (%p394) target = $region32
      $region31: #{_lambda_.6} parent=11 // pred_region
        _
      $region32: #{_lambda_.6} parent=11 // pred_fallthru
        _
      // Predicated region
      $region33: #{_lambda_.6} parent=11 // pred_check
        %p397 = pneg %p173
      $region34: #{_lambda_.6} parent=11 // pred_check_branch
        %399 = sbr.rel (%p397) target = $region36
      $region35: #{_lambda_.6} parent=11 // pred_region
        _
      $region36: #{_lambda_.6} parent=11 // pred_fallthru
        _
      // Predicated region
      $region37: #{_lambda_.6} parent=11 // pred_check
        %p400 = pneg %p194
      $region38: #{_lambda_.6} parent=11 // pred_check_branch
        %402 = sbr.rel (%p400) target = $region40
      $region39: #{_lambda_.6} parent=11 // pred_region
        _
      $region40: #{_lambda_.6} parent=11 // pred_fallthru
        _
      // Predicated region
      $region41: #{_lambda_.6} parent=11 // pred_check
        %p403 = pneg %p215
      $region42: #{_lambda_.6} parent=11 // pred_check_branch
        %405 = sbr.rel (%p403) target = $region44
      $region43: #{_lambda_.6} parent=11 // pred_region
        _
      $region44: #{_lambda_.6} parent=11 // pred_fallthru
        _
      // Predicated region
      $region45: #{_lambda_.6} parent=11 // pred_check
        %p406 = pneg %p236
      $region46: #{_lambda_.6} parent=11 // pred_check_branch
        %408 = sbr.rel (%p406) target = $region48
      $region47: #{_lambda_.6} parent=11 // pred_region
        _
      $region48: #{_lambda_.6} parent=11 // pred_fallthru
        _
      // Predicated region
      $region49: #{_lambda_.6} parent=11 // pred_check
        %p409 = pneg %p257
      $region50: #{_lambda_.6} parent=11 // pred_check_branch
        %411 = sbr.rel (%p409) target = $region52
      $region51: #{_lambda_.6} parent=11 // pred_region
        _
      $region52: #{_lambda_.6} parent=11 // pred_fallthru
        _
      // Predicated region
      $region53: #{_lambda_.6} parent=11 // pred_check
        %p412 = pneg %p278
      $region54: #{_lambda_.6} parent=11 // pred_check_branch
        %414 = sbr.rel (%p412) target = $region56
      $region55: #{_lambda_.6} parent=11 // pred_region
        _
      $region56: #{_lambda_.6} parent=11 // pred_fallthru
        _
      // Predicated region
      $region57: #{_lambda_.6} parent=11 // pred_check
        %p415 = pneg %p299
      $region58: #{_lambda_.6} parent=11 // pred_check_branch
        %417 = sbr.rel (%p415) target = $region60
      $region59: #{_lambda_.6} parent=11 // pred_region
        _
      $region60: #{_lambda_.6} parent=11 // pred_fallthru
        _
      // Predicated region
      $region61: #{_lambda_.6} parent=11 // pred_check
        %p418 = pneg %p320
      $region62: #{_lambda_.6} parent=11 // pred_check_branch
        %420 = sbr.rel (%p418) target = $region64
      $region63: #{_lambda_.6} parent=11 // pred_region
        _
      $region64: #{_lambda_.6} parent=11 // pred_fallthru
        _
      // Predicated region
      $region65: #{_lambda_.6} parent=11 // pred_check
        %p421 = pneg %p341
      $region66: #{_lambda_.6} parent=11 // pred_check_branch
        %423 = sbr.rel (%p421) target = $region68
      $region67: #{_lambda_.6} parent=11 // pred_region
        _
      $region68: #{_lambda_.6} parent=11 // pred_fallthru
        _
    $region12: #{_lambda_.6} parent=5 // pred_fallthru
      _
    %p424 = scmp.lt.s32.totalorder %s21, 2
    // Predicated region
    $region69: #{_lambda_.6} parent=5 // pred_check
      %p425 = pneg %p424
    $region70: #{_lambda_.6} parent=5 // pred_check_branch
      %427 = sbr.rel (%p425) target = $region72
    $region71: #{_lambda_.6} parent=5 // pred_region
      // Predicated region
      $region73: #{_lambda_.6} parent=71 // pred_check
        %p428 = pneg %p41
      $region74: #{_lambda_.6} parent=71 // pred_check_branch
        %430 = sbr.rel (%p428) target = $region76
      $region75: #{_lambda_.6} parent=71 // pred_region
        %p431 = scmp.lt.s32.totalorder %s21, 1
        %s432 = scalar_select %p431, %s21, 1
        %s433 = smul.addr %s432, 2
        %s434 = smul.addr %s433, 8
        %s435 = scalar_lea.vmem %s0, %s434
      $region76: #{_lambda_.6} parent=71 // pred_fallthru
        _
    $region72: #{_lambda_.6} parent=5 // pred_fallthru
      _
    %p436 = scmp.le.s32.totalorder 1, %s21
    %p437 = scmp.lt.s32.totalorder %s21, 3
    %p438 = pnand %p436, %p437
    %p439 = pneg %p438
    // Predicated region
    $region77: #{_lambda_.6} parent=5 // pred_check
      _
    $region78: #{_lambda_.6} parent=5 // pred_check_branch
      %441 = sbr.rel (%p438) target = $region80
    $region79: #{_lambda_.6} parent=5 // pred_region
      %s442 = ssub.s32 %s21, 1
      %p443 = scmp.lt.s32.totalorder %s26, 1
      %s444 = scalar_select %p443, %s26, 1
      %s445 = smul.addr %s444, 2
      %s446 = smul.addr %s445, 8
      %s447 = scalar_lea.vmem %s0, %s446
      %p448 = pneg %p47
      %p449 = pneg %p44
      %p450 = pneg %p68
      %p451 = pneg %p65
      %p452 = pneg %p89
      %p453 = pneg %p86
      %p454 = pneg %p110
      %p455 = pneg %p107
      %p456 = pneg %p131
      %p457 = pneg %p128
      %p458 = pneg %p152
      %p459 = pneg %p149
      %p460 = pneg %p173
      %p461 = pneg %p170
      %p462 = pneg %p194
      %p463 = pneg %p191
      %p464 = pneg %p215
      %p465 = pneg %p212
      %p466 = pneg %p236
      %p467 = pneg %p233
      %p468 = pneg %p257
      %p469 = pneg %p254
      %p470 = pneg %p278
      %p471 = pneg %p275
      %p472 = pneg %p299
      %p473 = pneg %p296
      %p474 = pneg %p320
      %p475 = pneg %p317
      %p476 = pneg %p341
      %p477 = pneg %p338
      %p478 = pneg %p367
      %p479 = pneg %p364
      %p480 = scmp.lt.s32.totalorder %s26, 1
      %s481 = scalar_select %p480, %s26, 1
      %s482 = smul.addr %s481, 2
      %s483 = smul.addr %s482, 8
      %s484 = scalar_lea.vmem %s15, %s483
      %p485 = scmp.lt.s32.totalorder %s26, 1
      %s486 = scalar_select %p485, %s26, 1
      %s487 = smul.addr %s486, 2
      %s488 = smul.addr %s487, 8
      %s489 = scalar_lea.vmem %s0, %s488
      %p490 = scmp.lt.s32.totalorder %s26, 1
      %s491 = scalar_select %p490, %s26, 1
      %s492 = smul.addr %s491, 2
      %s493 = smul.addr %s492, 8
      %s494 = scalar_lea.vmem %s15, %s493
      %v495 = vld [vmem:[%s489] sm:$0xff]
      %v496 = vld [vmem:[%s489 + $0x8] sm:$0xff]
      %v497 = vld [vmem:[%s1] sm:$0xff]
      %v498 = vld [vmem:[%s1 + $0x8] sm:$0xff]
      %v499 = vld [vmem:[%s2] sm:$0x1]
      %v501 = vlaneseq
      %v502 = vshrl.u32 %v501, 7
      %v503 = vsub.s32 0, %v502
      %v504 = vrot.slane %v499, %v503
      %vm506 = vcmask 130048
      %v508 = vsel %vm506, %v495, 0
      %v511 = vsel %vm506, %v496, 0
      %513 = vmatprep.subr.mxu0 0.0
      %514 = vmatpush1.msra.mxu0 0.0
      %515 = vmatprep.subr.mxu0 0.0
      %516 = vmatpush1.msra.mxu0 0.0
      %517 = vmatprep.subr.mxu0 0.0
      %518 = vmatpush1.msra.mxu0 0.0
      %519 = vmatprep.subr.mxu0 0.0
      %520 = vmatpush1.msra.mxu0 0.0
      %521 = vmatprep.subr.mxu0 0.0
      %522 = vmatpush1.msra.mxu0 0.0
      %523 = vmatprep.subr.mxu0 0.0
      %524 = vmatpush1.msra.mxu0 0.0
      %525 = vmatprep.subr.mxu0 0.0
      %526 = vmatpush1.msra.mxu0 0.0
      %527 = vmatprep.subr.mxu0 0.0
      %528 = vmatpush1.msra.mxu0 0.0
      %529 = vmatprep.subr.mxu0 0.0
      %530 = vmatpush1.msra.mxu0 0.0
      %531 = vmatprep.subr.mxu0 0.0
      %532 = vmatpush1.msra.mxu0 0.0
      %533 = vmatprep.subr.mxu0 0.0
      %534 = vmatpush1.msra.mxu0 0.0
      %535 = vmatprep.subr.mxu0 0.0
      %536 = vmatpush1.msra.mxu0 0.0
      %537 = vmatprep.subr.mxu0 0.0
      %538 = vmatpush1.msra.mxu0 0.0
      %539 = vmatprep.subr.mxu0 0.0
      %540 = vmatpush1.msra.mxu0 0.0
      %541 = vmatprep.subr.mxu0 0.0
      %542 = vmatpush1.msra.mxu0 %v498
      %543 = vmatprep.subr.mxu0 0.0
      %544 = vmatpush1.msra.mxu0 %v497
      %545 = vmatprep.subr.mxu0 0.0
      %546 = vmatpush2.msra.mxu0 0.0
      %547 = vmatprep.subr.mxu0 0.0
      %548 = vmatpush2.msra.mxu0 0.0
      %549 = vmatprep.subr.mxu0 0.0
      %550 = vmatpush2.msra.mxu0 0.0
      %551 = vmatprep.subr.mxu0 0.0
      %552 = vmatpush2.msra.mxu0 0.0
      %553 = vmatprep.subr.mxu0 0.0
      %554 = vmatpush2.msra.mxu0 0.0
      %555 = vmatprep.subr.mxu0 0.0
      %556 = vmatpush2.msra.mxu0 0.0
      %557 = vmatprep.subr.mxu0 0.0
      %558 = vmatpush2.msra.mxu0 0.0
      %559 = vmatprep.subr.mxu0 0.0
      %560 = vmatpush2.msra.mxu0 0.0
      %561 = vmatprep.subr.mxu0 0.0
      %562 = vmatpush2.msra.mxu0 0.0
      %563 = vmatprep.subr.mxu0 0.0
      %564 = vmatpush2.msra.mxu0 0.0
      %565 = vmatprep.subr.mxu0 0.0
      %566 = vmatpush2.msra.mxu0 0.0
      %567 = vmatprep.subr.mxu0 0.0
      %568 = vmatpush2.msra.mxu0 0.0
      %569 = vmatprep.subr.mxu0 0.0
      %570 = vmatpush2.msra.mxu0 0.0
      %571 = vmatprep.subr.mxu0 0.0
      %572 = vmatpush2.msra.mxu0 0.0
      %573 = vmatprep.subr.mxu0 0.0
      %574 = vmatpush2.msra.mxu0 0.0
      %575 = vmatprep.subr.mxu0 0.0
      %576 = vmatpush2.msra.mxu0 0.0
      %577 = vmatprep.mubr.f32.mxu0 0.0
      %578 = vmatmul.mubr.f32.gmra.mxu0 %v508
      %v579 = vpop.f32.mrf.mxu0
      %v580 = vadd.f32 %v504, %v579
      %v581 = vpop.f32.mrf.mxu0
      %582 = vmatprep.mubr.f32.mxu0 0.0
      %583 = vmatmul.mubr.f32.gmra.mxu0 %v511
      %v584 = vpop.f32.mrf.mxu0
      %v585 = vadd.f32 %v504, %v584
      %v586 = vpop.f32.mrf.mxu0
      %587 = vdwg.mxu0
      %588 = vst.msk [vmem:[#allocation2] sm:$0xff] %vm506, 0.0
      %589 = vst.msk [vmem:[#allocation2 + $0x8] sm:$0xff] %vm506, 0.0
      %590 = vst.msk [vmem:[#allocation2 + $0x10] sm:$0xff] %vm506, 0.0
      %vm591 = vcmask 123904
      %592 = vst.msk [vmem:[#allocation2 + $0x18] sm:$0x3] %vm591, 0.0
      %593 = vst.msk [vmem:[#allocation2 + $0x8] sm:$0xff] %vm506, %v580
      %594 = vst.msk [vmem:[#allocation2 + $0x10] sm:$0xff] %vm506, %v585
      %v595 = vld [vmem:[%s4] sm:$0x1]
      %v596 = vld [vmem:[#allocation2 + $0x6] sm:$0xff]
      %v597 = vld [vmem:[#allocation2 + $0xe] sm:$0xff]
      %v598 = vld [vmem:[%s3] sm:$0x1]
      %v599 = vlaneseq
      %v600 = vshrl.u32 %v599, 7
      %v601 = vsub.s32 0, %v600
      %v602 = vrot.slane %v598, %v601
      %v603 = vmul.f32 %v596, %v602
      %v604 = vmul.f32 %v597, %v602
      %v606 = vlaneseq
      %v607 = vshrl.u32 %v606, 7
      %v608 = vsub.s32 0, %v607
      %v609 = vrot.slane %v595, %v608
      %v611 = vadd.f32 %v609, %v603
      %v612 = vadd.f32 %v609, %v604
      %v613 = vld [vmem:[#allocation2 + $0x7] sm:$0xff]
      %v614 = vld [vmem:[#allocation2 + $0xf] sm:$0xff]
      %v615 = vld [vmem:[%s3 + $0x1] sm:$0x1]
      %v616 = vlaneseq
      %v617 = vshrl.u32 %v616, 7
      %v618 = vsub.s32 0, %v617
      %v619 = vrot.slane %v615, %v618
      %v620 = vmul.f32 %v613, %v619
      %v621 = vmul.f32 %v614, %v619
      %v622 = vadd.f32 %v611, %v620
      %v623 = vadd.f32 %v612, %v621
      %v624 = vld [vmem:[#allocation2 + $0x8] sm:$0xff]
      %v625 = vld [vmem:[#allocation2 + $0x10] sm:$0xff]
      %v626 = vld [vmem:[%s3 + $0x2] sm:$0x1]
      %v627 = vlaneseq
      %v628 = vshrl.u32 %v627, 7
      %v629 = vsub.s32 0, %v628
      %v630 = vrot.slane %v626, %v629
      %v631 = vmul.f32 %v624, %v630
      %v632 = vmul.f32 %v625, %v630
      %v633 = vadd.f32 %v622, %v631
      %v634 = vadd.f32 %v623, %v632
      %v635 = vld [vmem:[#allocation2 + $0x9] sm:$0xff]
      %v636 = vld [vmem:[#allocation2 + $0x11] sm:$0xff]
      %v637 = vld [vmem:[%s3 + $0x3] sm:$0x1]
      %v638 = vlaneseq
      %v639 = vshrl.u32 %v638, 7
      %v640 = vsub.s32 0, %v639
      %v641 = vrot.slane %v637, %v640
      %v642 = vmul.f32 %v635, %v641
      %v643 = vmul.f32 %v636, %v641
      %v644 = vadd.f32 %v633, %v642
      %v645 = vadd.f32 %v634, %v643
      %v646 = vld [vmem:[#allocation2 + $0xa] sm:$0xff]
      %v647 = vld [vmem:[#allocation2 + $0x12] sm:$0xff]
      %v648 = vld [vmem:[%s3 + $0x4] sm:$0x1]
      %v649 = vlaneseq
      %v650 = vshrl.u32 %v649, 7
      %v651 = vsub.s32 0, %v650
      %v652 = vrot.slane %v648, %v651
      %v653 = vmul.f32 %v646, %v652
      %v654 = vmul.f32 %v647, %v652
      %v655 = vadd.f32 %v644, %v653
      %v656 = vadd.f32 %v645, %v654
      %v657 = vmul.f32 %v655, 0.5
      %v658 = vmul.f32 %v656, 0.5
      %v659 = vmul.f32 %v655, 0.044715
      %v660 = vmul.f32 %v656, 0.044715
      %v661 = vmul.f32 %v659, %v655
      %v662 = vmul.f32 %v660, %v656
      %v663 = vmul.f32 %v661, %v655
      %v664 = vmul.f32 %v662, %v656
      %v665 = vadd.f32 %v655, %v663
      %v666 = vadd.f32 %v656, %v664
      %v667 = vmul.f32 %v665, 0.7978846
      %v668 = vmul.f32 %v666, 0.7978846
      %v669 = vtanh.pop %v667
      %v670 = vtanh.pop %v668
      %v671 = vadd.f32 %v669, 1.0
      %v672 = vadd.f32 %v670, 1.0
      %v673 = vmul.f32 %v657, %v671
      %v674 = vmul.f32 %v658, %v672
      %v675 = vld [vmem:[%s5] sm:$0xff]
      %v676 = vld [vmem:[%s5 + $0x8] sm:$0xff]
      %v677 = vld [vmem:[%s6] sm:$0x1]
      %v679 = vlaneseq
      %v680 = vshrl.u32 %v679, 7
      %v681 = vsub.s32 0, %v680
      %v682 = vrot.slane %v677, %v681
      %v685 = vsel %vm506, %v673, 0
      %v688 = vsel %vm506, %v674, 0
      %690 = vmatprep.subr.mxu0 0.0
      %691 = vmatpush1.msra.mxu0 0.0
      %692 = vmatprep.subr.mxu0 0.0
      %693 = vmatpush1.msra.mxu0 0.0
      %694 = vmatprep.subr.mxu0 0.0
      %695 = vmatpush1.msra.mxu0 0.0
      %696 = vmatprep.subr.mxu0 0.0
      %697 = vmatpush1.msra.mxu0 0.0
      %698 = vmatprep.subr.mxu0 0.0
      %699 = vmatpush1.msra.mxu0 0.0
      %700 = vmatprep.subr.mxu0 0.0
      %701 = vmatpush1.msra.mxu0 0.0
      %702 = vmatprep.subr.mxu0 0.0
      %703 = vmatpush1.msra.mxu0 0.0
      %704 = vmatprep.subr.mxu0 0.0
      %705 = vmatpush1.msra.mxu0 0.0
      %706 = vmatprep.subr.mxu0 0.0
      %707 = vmatpush1.msra.mxu0 0.0
      %708 = vmatprep.subr.mxu0 0.0
      %709 = vmatpush1.msra.mxu0 0.0
      %710 = vmatprep.subr.mxu0 0.0
      %711 = vmatpush1.msra.mxu0 0.0
      %712 = vmatprep.subr.mxu0 0.0
      %713 = vmatpush1.msra.mxu0 0.0
      %714 = vmatprep.subr.mxu0 0.0
      %715 = vmatpush1.msra.mxu0 0.0
      %716 = vmatprep.subr.mxu0 0.0
      %717 = vmatpush1.msra.mxu0 0.0
      %718 = vmatprep.subr.mxu0 0.0
      %719 = vmatpush1.msra.mxu0 %v676
      %720 = vmatprep.subr.mxu0 0.0
      %721 = vmatpush1.msra.mxu0 %v675
      %722 = vmatprep.subr.mxu0 0.0
      %723 = vmatpush2.msra.mxu0 0.0
      %724 = vmatprep.subr.mxu0 0.0
      %725 = vmatpush2.msra.mxu0 0.0
      %726 = vmatprep.subr.mxu0 0.0
      %727 = vmatpush2.msra.mxu0 0.0
      %728 = vmatprep.subr.mxu0 0.0
      %729 = vmatpush2.msra.mxu0 0.0
      %730 = vmatprep.subr.mxu0 0.0
      %731 = vmatpush2.msra.mxu0 0.0
      %732 = vmatprep.subr.mxu0 0.0
      %733 = vmatpush2.msra.mxu0 0.0
      %734 = vmatprep.subr.mxu0 0.0
      %735 = vmatpush2.msra.mxu0 0.0
      %736 = vmatprep.subr.mxu0 0.0
      %737 = vmatpush2.msra.mxu0 0.0
      %738 = vmatprep.subr.mxu0 0.0
      %739 = vmatpush2.msra.mxu0 0.0
      %740 = vmatprep.subr.mxu0 0.0
      %741 = vmatpush2.msra.mxu0 0.0
      %742 = vmatprep.subr.mxu0 0.0
      %743 = vmatpush2.msra.mxu0 0.0
      %744 = vmatprep.subr.mxu0 0.0
      %745 = vmatpush2.msra.mxu0 0.0
      %746 = vmatprep.subr.mxu0 0.0
      %747 = vmatpush2.msra.mxu0 0.0
      %748 = vmatprep.subr.mxu0 0.0
      %749 = vmatpush2.msra.mxu0 0.0
      %750 = vmatprep.subr.mxu0 0.0
      %751 = vmatpush2.msra.mxu0 0.0
      %752 = vmatprep.subr.mxu0 0.0
      %753 = vmatpush2.msra.mxu0 0.0
      %754 = vmatprep.mubr.f32.mxu0 0.0
      %755 = vmatmul.mubr.f32.gmra.mxu0 %v685
      %v756 = vpop.f32.mrf.mxu0
      %v757 = vadd.f32 %v682, %v756
      %v758 = vpop.f32.mrf.mxu0
      %759 = vmatprep.mubr.f32.mxu0 0.0
      %760 = vmatmul.mubr.f32.gmra.mxu0 %v688
      %v761 = vpop.f32.mrf.mxu0
      %v762 = vadd.f32 %v682, %v761
      %v763 = vpop.f32.mrf.mxu0
      %764 = vdwg.mxu0
      %v765 = vadd.f32 %v495, %v757
      %v766 = vadd.f32 %v496, %v762
      %v767 = vld [vmem:[%s7] sm:$0x1]
      %v768 = vld [vmem:[%s8] sm:$0x1]
      %v769 = vsel %vm506, %v765, 0.0
      %770 = vadd.xlane.f32.xlu0 %v769
      %v771 = vpop.xlane.xlu0 %770
      %v772 = vsel %vm506, %v766, 0.0
      %773 = vadd.xlane.f32.xlu0 %v772
      %v774 = vpop.xlane.xlu0 %773
      %v775 = vrcp.pop 16.0
      %v776 = vmul.f32 %v771, %v775
      %v777 = vmul.f32 %v774, %v775
      %v778 = vsub.f32 %v765, %v776
      %v779 = vsub.f32 %v766, %v777
      %v780 = vmul.f32 %v778, %v778
      %v781 = vmul.f32 %v779, %v779
      %v782 = vsel %vm506, %v780, 0.0
      %783 = vadd.xlane.f32.xlu0 %v782
      %v784 = vpop.xlane.xlu0 %783
      %v785 = vsel %vm506, %v781, 0.0
      %786 = vadd.xlane.f32.xlu0 %v785
      %v787 = vpop.xlane.xlu0 %786
      %v788 = vmul.f32 %v784, %v775
      %v789 = vmul.f32 %v787, %v775
      %v790 = vadd.f32 %v788, 1e-06
      %v791 = vadd.f32 %v789, 1e-06
      %v792 = vrsqrt.pop %v790
      %v793 = vrsqrt.pop %v791
      %v794 = vmul.f32 %v778, %v792
      %v795 = vmul.f32 %v779, %v793
      %v797 = vlaneseq
      %v798 = vshrl.u32 %v797, 7
      %v799 = vsub.s32 0, %v798
      %v800 = vrot.slane %v767, %v799
      %v802 = vmul.f32 %v794, %v800
      %v803 = vmul.f32 %v795, %v800
      %v805 = vlaneseq
      %v806 = vshrl.u32 %v805, 7
      %v807 = vsub.s32 0, %v806
      %v808 = vrot.slane %v768, %v807
      %v810 = vadd.f32 %v802, %v808
      %v811 = vadd.f32 %v803, %v808
      %v812 = vld [vmem:[%s9] sm:$0xff]
      %v813 = vld [vmem:[%s9 + $0x8] sm:$0xff]
      %v814 = vld [vmem:[%s10] sm:$0x1]
      %v816 = vlaneseq
      %v817 = vshrl.u32 %v816, 7
      %v818 = vsub.s32 0, %v817
      %v819 = vrot.slane %v814, %v818
      %v822 = vsel %vm506, %v810, 0
      %v825 = vsel %vm506, %v811, 0
      %827 = vmatprep.subr.mxu0 0.0
      %828 = vmatpush1.msra.mxu0 0.0
      %829 = vmatprep.subr.mxu0 0.0
      %830 = vmatpush1.msra.mxu0 0.0
      %831 = vmatprep.subr.mxu0 0.0
      %832 = vmatpush1.msra.mxu0 0.0
      %833 = vmatprep.subr.mxu0 0.0
      %834 = vmatpush1.msra.mxu0 0.0
      %835 = vmatprep.subr.mxu0 0.0
      %836 = vmatpush1.msra.mxu0 0.0
      %837 = vmatprep.subr.mxu0 0.0
      %838 = vmatpush1.msra.mxu0 0.0
      %839 = vmatprep.subr.mxu0 0.0
      %840 = vmatpush1.msra.mxu0 0.0
      %841 = vmatprep.subr.mxu0 0.0
      %842 = vmatpush1.msra.mxu0 0.0
      %843 = vmatprep.subr.mxu0 0.0
      %844 = vmatpush1.msra.mxu0 0.0
      %845 = vmatprep.subr.mxu0 0.0
      %846 = vmatpush1.msra.mxu0 0.0
      %847 = vmatprep.subr.mxu0 0.0
      %848 = vmatpush1.msra.mxu0 0.0
      %849 = vmatprep.subr.mxu0 0.0
      %850 = vmatpush1.msra.mxu0 0.0
      %851 = vmatprep.subr.mxu0 0.0
      %852 = vmatpush1.msra.mxu0 0.0
      %853 = vmatprep.subr.mxu0 0.0
      %854 = vmatpush1.msra.mxu0 0.0
      %855 = vmatprep.subr.mxu0 0.0
      %856 = vmatpush1.msra.mxu0 %v813
      %857 = vmatprep.subr.mxu0 0.0
      %858 = vmatpush1.msra.mxu0 %v812
      %859 = vmatprep.subr.mxu0 0.0
      %860 = vmatpush2.msra.mxu0 0.0
      %861 = vmatprep.subr.mxu0 0.0
      %862 = vmatpush2.msra.mxu0 0.0
      %863 = vmatprep.subr.mxu0 0.0
      %864 = vmatpush2.msra.mxu0 0.0
      %865 = vmatprep.subr.mxu0 0.0
      %866 = vmatpush2.msra.mxu0 0.0
      %867 = vmatprep.subr.mxu0 0.0
      %868 = vmatpush2.msra.mxu0 0.0
      %869 = vmatprep.subr.mxu0 0.0
      %870 = vmatpush2.msra.mxu0 0.0
      %871 = vmatprep.subr.mxu0 0.0
      %872 = vmatpush2.msra.mxu0 0.0
      %873 = vmatprep.subr.mxu0 0.0
      %874 = vmatpush2.msra.mxu0 0.0
      %875 = vmatprep.subr.mxu0 0.0
      %876 = vmatpush2.msra.mxu0 0.0
      %877 = vmatprep.subr.mxu0 0.0
      %878 = vmatpush2.msra.mxu0 0.0
      %879 = vmatprep.subr.mxu0 0.0
      %880 = vmatpush2.msra.mxu0 0.0
      %881 = vmatprep.subr.mxu0 0.0
      %882 = vmatpush2.msra.mxu0 0.0
      %883 = vmatprep.subr.mxu0 0.0
      %884 = vmatpush2.msra.mxu0 0.0
      %885 = vmatprep.subr.mxu0 0.0
      %886 = vmatpush2.msra.mxu0 0.0
      %887 = vmatprep.subr.mxu0 0.0
      %888 = vmatpush2.msra.mxu0 0.0
      %889 = vmatprep.subr.mxu0 0.0
      %890 = vmatpush2.msra.mxu0 0.0
      %891 = vmatprep.mubr.f32.mxu0 0.0
      %892 = vmatmul.mubr.f32.gmra.mxu0 %v822
      %v893 = vpop.f32.mrf.mxu0
      %v894 = vadd.f32 %v819, %v893
      %v895 = vpop.f32.mrf.mxu0
      %896 = vmatprep.mubr.f32.mxu0 0.0
      %897 = vmatmul.mubr.f32.gmra.mxu0 %v825
      %v898 = vpop.f32.mrf.mxu0
      %v899 = vadd.f32 %v819, %v898
      %v900 = vpop.f32.mrf.mxu0
      %901 = vdwg.mxu0
      %v902 = vmul.f32 %v894, 0.5
      %v903 = vmul.f32 %v899, 0.5
      %v904 = vmul.f32 %v894, 0.044715
      %v905 = vmul.f32 %v899, 0.044715
      %v906 = vmul.f32 %v904, %v894
      %v907 = vmul.f32 %v905, %v899
      %v908 = vmul.f32 %v906, %v894
      %v909 = vmul.f32 %v907, %v899
      %v910 = vadd.f32 %v894, %v908
      %v911 = vadd.f32 %v899, %v909
      %v912 = vmul.f32 %v910, 0.7978846
      %v913 = vmul.f32 %v911, 0.7978846
      %v914 = vtanh.pop %v912
      %v915 = vtanh.pop %v913
      %v916 = vadd.f32 %v914, 1.0
      %v917 = vadd.f32 %v915, 1.0
      %v918 = vmul.f32 %v902, %v916
      %v919 = vmul.f32 %v903, %v917
      %v920 = vmul.f32 %v918, %v918
      %v921 = vmul.f32 %v919, %v919
      %vm922 = vcmask 523264
      %v923 = vsel %vm922, %v920, 0.0
      %v924 = vsel %vm922, %v921, 0.0
      %v925 = vadd.f32 %v923, %v924
      %v926 = vrot.slane %v925, 4
      %v927 = vadd.f32 %v925, %v926
      %v928 = vrot.slane %v927, 2
      %v929 = vadd.f32 %v927, %v928
      %v930 = vrot.slane %v929, 1
      %v931 = vadd.f32 %v929, %v930
      %v932 = vrsqrt.pop %v931
      %v933 = vmul.f32 %v931, %v932
      %vm934 = vcmp.eq.f32.partialorder %v931, inf
      %v935 = vsel %vm934, %v931, %v933
      %vm936 = vcmp.eq.f32.partialorder %v931, 0.0
      %v937 = vand.u32 %v931, 2147483648
      %v938 = vsel %vm936, %v937, %v935
      %v939 = vsel %vm922, %v938, 0.0
      %940 = vadd.xlane.f32.xlu0 %v939
      %v941 = vpop.xlane.xlu0 %940
      %v942 = vrcp.pop 64.0
      %v943 = vmul.f32 %v941, %v942
      %v944 = vadd.f32 %v943, 1e-06
      %v945 = vrcp.pop %v944
      %v946 = vmul.f32 %v938, %v945
      %v947 = vld [vmem:[%s11] sm:$0x1]
      %v948 = vmul.f32 %v918, %v946
      %v949 = vmul.f32 %v919, %v946
      %v951 = vlaneseq
      %v952 = vshrl.u32 %v951, 7
      %v953 = vsub.s32 0, %v952
      %v954 = vrot.slane %v947, %v953
      %v956 = vmul.f32 %v954, %v948
      %v957 = vmul.f32 %v954, %v949
      %v958 = vld [vmem:[%s12] sm:$0x1]
      %v960 = vlaneseq
      %v961 = vshrl.u32 %v960, 7
      %v962 = vsub.s32 0, %v961
      %v963 = vrot.slane %v958, %v962
      %v965 = vadd.f32 %v956, %v963
      %v966 = vadd.f32 %v957, %v963
      %v967 = vadd.f32 %v965, %v918
      %v968 = vadd.f32 %v966, %v919
      %v969 = vld [vmem:[%s13] sm:$0xff]
      %v970 = vld [vmem:[%s13 + $0x8] sm:$0xff]
      %v971 = vld [vmem:[%s13 + $0x10] sm:$0xff]
      %v972 = vld [vmem:[%s13 + $0x18] sm:$0xff]
      %v973 = vld [vmem:[%s13 + $0x20] sm:$0xff]
      %v974 = vld [vmem:[%s13 + $0x28] sm:$0xff]
      %v975 = vld [vmem:[%s13 + $0x30] sm:$0xff]
      %v976 = vld [vmem:[%s13 + $0x38] sm:$0xff]
      %v977 = vld [vmem:[%s14] sm:$0x1]
      %v979 = vlaneseq
      %v980 = vshrl.u32 %v979, 7
      %v981 = vsub.s32 0, %v980
      %v982 = vrot.slane %v977, %v981
      %v985 = vsel %vm922, %v967, 0
      %v988 = vsel %vm922, %v968, 0
      %990 = vmatprep.subr.mxu0 0.0
      %991 = vmatpush1.msra.mxu0 0.0
      %992 = vmatprep.subr.mxu0 0.0
      %993 = vmatpush1.msra.mxu0 0.0
      %994 = vmatprep.subr.mxu0 0.0
      %995 = vmatpush1.msra.mxu0 0.0
      %996 = vmatprep.subr.mxu0 0.0
      %997 = vmatpush1.msra.mxu0 0.0
      %998 = vmatprep.subr.mxu0 0.0
      %999 = vmatpush1.msra.mxu0 0.0
      %1000 = vmatprep.subr.mxu0 0.0
      %1001 = vmatpush1.msra.mxu0 0.0
      %1002 = vmatprep.subr.mxu0 0.0
      %1003 = vmatpush1.msra.mxu0 0.0
      %1004 = vmatprep.subr.mxu0 0.0
      %1005 = vmatpush1.msra.mxu0 0.0
      %1006 = vmatprep.subr.mxu0 0.0
      %1007 = vmatpush1.msra.mxu0 %v976
      %1008 = vmatprep.subr.mxu0 0.0
      %1009 = vmatpush1.msra.mxu0 %v975
      %1010 = vmatprep.subr.mxu0 0.0
      %1011 = vmatpush1.msra.mxu0 %v974
      %1012 = vmatprep.subr.mxu0 0.0
      %1013 = vmatpush1.msra.mxu0 %v973
      %1014 = vmatprep.subr.mxu0 0.0
      %1015 = vmatpush1.msra.mxu0 %v972
      %1016 = vmatprep.subr.mxu0 0.0
      %1017 = vmatpush1.msra.mxu0 %v971
      %1018 = vmatprep.subr.mxu0 0.0
      %1019 = vmatpush1.msra.mxu0 %v970
      %1020 = vmatprep.subr.mxu0 0.0
      %1021 = vmatpush1.msra.mxu0 %v969
      %1022 = vmatprep.subr.mxu0 0.0
      %1023 = vmatpush2.msra.mxu0 0.0
      %1024 = vmatprep.subr.mxu0 0.0
      %1025 = vmatpush2.msra.mxu0 0.0
      %1026 = vmatprep.subr.mxu0 0.0
      %1027 = vmatpush2.msra.mxu0 0.0
      %1028 = vmatprep.subr.mxu0 0.0
      %1029 = vmatpush2.msra.mxu0 0.0
      %1030 = vmatprep.subr.mxu0 0.0
      %1031 = vmatpush2.msra.mxu0 0.0
      %1032 = vmatprep.subr.mxu0 0.0
      %1033 = vmatpush2.msra.mxu0 0.0
      %1034 = vmatprep.subr.mxu0 0.0
      %1035 = vmatpush2.msra.mxu0 0.0
      %1036 = vmatprep.subr.mxu0 0.0
      %1037 = vmatpush2.msra.mxu0 0.0
      %1038 = vmatprep.subr.mxu0 0.0
      %1039 = vmatpush2.msra.mxu0 0.0
      %1040 = vmatprep.subr.mxu0 0.0
      %1041 = vmatpush2.msra.mxu0 0.0
      %1042 = vmatprep.subr.mxu0 0.0
      %1043 = vmatpush2.msra.mxu0 0.0
      %1044 = vmatprep.subr.mxu0 0.0
      %1045 = vmatpush2.msra.mxu0 0.0
      %1046 = vmatprep.subr.mxu0 0.0
      %1047 = vmatpush2.msra.mxu0 0.0
      %1048 = vmatprep.subr.mxu0 0.0
      %1049 = vmatpush2.msra.mxu0 0.0
      %1050 = vmatprep.subr.mxu0 0.0
      %1051 = vmatpush2.msra.mxu0 0.0
      %1052 = vmatprep.subr.mxu0 0.0
      %1053 = vmatpush2.msra.mxu0 0.0
      %1054 = vmatprep.mubr.f32.mxu0 0.0
      %1055 = vmatmul.mubr.f32.gmra.mxu0 %v985
      %v1056 = vpop.f32.mrf.mxu0
      %v1057 = vadd.f32 %v982, %v1056
      %v1058 = vpop.f32.mrf.mxu0
      %1059 = vmatprep.mubr.f32.mxu0 0.0
      %1060 = vmatmul.mubr.f32.gmra.mxu0 %v988
      %v1061 = vpop.f32.mrf.mxu0
      %v1062 = vadd.f32 %v982, %v1061
      %v1063 = vpop.f32.mrf.mxu0
      %1064 = vdwg.mxu0
      %v1065 = vadd.f32 %v765, %v1057
      %v1066 = vadd.f32 %v766, %v1062
      %1067 = vst.msk [vmem:[%s494] sm:$0xff] %vm506, %v1065
      %1068 = vst.msk [vmem:[%s494 + $0x8] sm:$0xff] %vm506, %v1066
      %p1069 = scmp.lt.s32.totalorder %s26, 1
      %s1070 = scalar_select %p1069, %s26, 1
      %s1071 = smul.addr %s1070, 2
      %s1072 = smul.addr %s1071, 8
      %s1073 = scalar_lea.vmem %s15, %s1072
      // Predicated region
      $region81: #{_lambda_.6} parent=79 // pred_check
        %p1074 = pneg %p364
      $region82: #{_lambda_.6} parent=79 // pred_check_branch
        %1076 = sbr.rel (%p1074) target = $region84
      $region83: #{_lambda_.6} parent=79 // pred_region
        _
      $region84: #{_lambda_.6} parent=79 // pred_fallthru
        _
    $region80: #{_lambda_.6} parent=5 // pred_fallthru
      _
    %p1077 = scmp.le.s32.totalorder 2, %s21
    // Predicated region
    $region85: #{_lambda_.6} parent=5 // pred_check
      %p1078 = pneg %p1077
    $region86: #{_lambda_.6} parent=5 // pred_check_branch
      %1080 = sbr.rel (%p1078) target = $region88
    $region87: #{_lambda_.6} parent=5 // pred_region
      %s1081 = ssub.s32 %s21, 2
      // Predicated region
      $region89: #{_lambda_.6} parent=87 // pred_check
        %p1082 = pneg %p370
      $region90: #{_lambda_.6} parent=87 // pred_check_branch
        %1084 = sbr.rel (%p1082) target = $region92
      $region91: #{_lambda_.6} parent=87 // pred_region
        %p1085 = scmp.lt.s32.totalorder %s27, 1
        %s1086 = scalar_select %p1085, %s27, 1
        %s1087 = smul.addr %s1086, 2
        %s1088 = smul.addr %s1087, 8
        %s1089 = scalar_lea.vmem %s15, %s1088
      $region92: #{_lambda_.6} parent=87 // pred_fallthru
        _
    $region88: #{_lambda_.6} parent=5 // pred_fallthru
      _
  $region6: #{_lambda_.6} parent=0 // loop_footer
    %s25 = sadd.s32 1, %s21
  $region7: #{_lambda_.6} parent=0 // loop_footer_branch
    %20 = sbr.rel target = $region3
  $region8: #{_lambda_.6} parent=0 // loop_exit
    _

</llo_original>
